<compile_context>
chip_gen: v6e
topology: v6e:2x2x1
jax: 0.10.0
libtpu: 0.0.40
codegen_flags: <defaults>
</compile_context>

<pallas_src>
from functools import partial

import jax
import jax.numpy as jnp
from jax.experimental import pallas as pl
from jax.experimental.pallas import tpu as pltpu


NEG_SLOPE = 0.2
BN_EPS = 1e-5


def _round_up(x, m):
    return -(-x // m) * m


def _vmem_limit_bytes():
    """Per-generation scoped-VMEM budget: half of physical, capped at 64 MiB.
    v5e/v6e (128 MiB) -> 64 MiB, v7x (64 MiB per TC) -> 32 MiB."""
    try:
        cap = int(pltpu.get_tpu_info().vmem_capacity_bytes)
    except Exception:
        cap = 64 * 1024 * 1024  # conservative fallback: assume v7x-sized VMEM
    return int(min(cap // 2, 64 * 1024 * 1024))


def _pick_tile_m(M, K, Cout, vmem_limit):
    """Largest lane-dense M tile (multiple of 128, capped at 2048) whose
    double-buffered bf16 patch + output working set fits in the VMEM budget."""
    budget = vmem_limit - (4 << 20)            # pipeline / internal scratch slack
    fixed = 2 * 2 * Cout * K + (1 << 20)       # resident bf16 weights (+ slack)
    per_col = 2 * 2 * (K + Cout)               # dbl-buffered bf16 patch + out col
    avail = max(budget - fixed, per_col * 256)
    cap = max(256, min(2048, (avail // per_col) // 128 * 128))
    return int(min(cap, _round_up(M, 128)))


# ---------------------------------------------------------------------------
# Kernels
# ---------------------------------------------------------------------------
def _conv_bias_act_kernel(p_ref, w_ref, b_ref, o_ref, *, use_act):
    """(Cout,K) @ (K,TILE_M) + bias (+ LeakyReLU).  bf16 MXU, f32 accumulate."""
    y = jnp.dot(w_ref[...], p_ref[...], preferred_element_type=jnp.float32)
    y = y + b_ref[...]
    if use_act:
        y = jnp.maximum(y, NEG_SLOPE * y)      # LeakyReLU(0.2): one VPU max
    o_ref[...] = y.astype(o_ref.dtype)


def _conv_stats_kernel(p_ref, w_ref, y_ref, psum_ref, psq_ref):
    """Conv matmul, store pre-BN y plus per-tile per-channel sum / sumsq.
    Single pass over the patch slab: no recompute, no placeholder store.
    Tiles are independent -> M axis can be 'parallel' (v7x 2-TC sharding)."""
    y = jnp.dot(w_ref[...], p_ref[...], preferred_element_type=jnp.float32)
    y_ref[...] = y.astype(y_ref.dtype)
    # Stats computed from the f32 accumulator (zero-padded M columns add 0).
    psum_ref[...] = jnp.sum(y, axis=1, keepdims=True)[None]        # (1,Cout,1)
    psq_ref[...] = jnp.sum(y * y, axis=1, keepdims=True)[None]     # (1,Cout,1)


def _bn_act_kernel(y_ref, s_ref, b_ref, o_ref):
    """Apply folded BatchNorm scale/shift + LeakyReLU to the stored pre-BN y."""
    z = y_ref[...].astype(jnp.float32) * s_ref[...] + b_ref[...]
    o_ref[...] = jnp.maximum(z, NEG_SLOPE * z).astype(o_ref.dtype)


# ---------------------------------------------------------------------------
# Wrapper
# ---------------------------------------------------------------------------
def _im2col_cnhw(x, k, s, p):
    """x: (C, N, H, W) -> patches (k*k*C, N*Ho*Wo); row order (kh, kw, c),
    column order (n, ho, wo) so the kernel output (Cout, M) is directly the
    next layer's CNHW activation."""
    C, N, H, W = x.shape
    xp = jnp.pad(x, ((0, 0), (0, 0), (p, p), (p, p))) if p else x
    Ho = (H + 2 * p - k) // s + 1
    Wo = (W + 2 * p - k) // s + 1
    cols = [xp[:, :, i:i + s * Ho:s, j:j + s * Wo:s]
            for i in range(k) for j in range(k)]          # each (C, N, Ho, Wo)
    pat = jnp.stack(cols, axis=0).reshape(k * k * C, N * Ho * Wo)
    return pat, Ho, Wo


def conv_layer(x_cnhw, w2, b, g, bt, *, stride, pad, use_bn,
               out_dtype=jnp.bfloat16):
    """One conv(+BN)(+LeakyReLU) layer. x_cnhw: (Cin, N, H, W) bf16."""
    Cout, K = w2.shape
    _, N, _, _ = x_cnhw.shape
    patches, Ho, Wo = _im2col_cnhw(x_cnhw, 4, stride, pad)
    M = N * Ho * Wo

    vmem_limit = _vmem_limit_bytes()
    tile_m = _pick_tile_m(M, K, Cout, vmem_limit)
    m_pad = _round_up(M, tile_m)
    if m_pad != M:
        # Zero columns: exact for BN stats (bias dropped, 0 contribution,
        # divide by the true M); sliced away for non-BN layers below.
        patches = jnp.pad(patches, ((0, 0), (0, m_pad - M)))
    grid_m = m_pad // tile_m
    patches = patches.astype(jnp.bfloat16)

    cparams = pltpu.CompilerParams(
        dimension_semantics=("parallel",),      # independent M tiles
        vmem_limit_bytes=vmem_limit)

    if not use_bn:
        y = pl.pallas_call(
            partial(_conv_bias_act_kernel, use_act=True),
            out_shape=jax.ShapeDtypeStruct((Cout, m_pad), out_dtype),
            grid_spec=pltpu.PrefetchScalarGridSpec(
                num_scalar_prefetch=0, grid=(grid_m,),
                in_specs=[pl.BlockSpec((K, tile_m), lambda m: (0, m)),
                          pl.BlockSpec((Cout, K), lambda m: (0, 0)),    # resident
                          pl.BlockSpec((Cout, 1), lambda m: (0, 0))],   # bias
                out_specs=pl.BlockSpec((Cout, tile_m), lambda m: (0, m))),
            compiler_params=cparams,
        )(patches, w2, b.reshape(Cout, 1).astype(jnp.float32))
    else:
        # Pass 1: conv + per-tile channel stats (single patch read, single store).
        # Conv bias is dropped: exactly cancelled by training-mode BN's mean
        # subtraction (eval-mode running stats would need it reinstated).
        y_raw, psum, psq = pl.pallas_call(
            _conv_stats_kernel,
            out_shape=(jax.ShapeDtypeStruct((Cout, m_pad), jnp.bfloat16),
                       jax.ShapeDtypeStruct((grid_m, Cout, 1), jnp.float32),
                       jax.ShapeDtypeStruct((grid_m, Cout, 1), jnp.float32)),
            grid_spec=pltpu.PrefetchScalarGridSpec(
                num_scalar_prefetch=0, grid=(grid_m,),
                in_specs=[pl.BlockSpec((K, tile_m), lambda m: (0, m)),
                          pl.BlockSpec((Cout, K), lambda m: (0, 0))],   # resident
                out_specs=(pl.BlockSpec((Cout, tile_m), lambda m: (0, m)),
                           pl.BlockSpec((1, Cout, 1), lambda m: (m, 0, 0)),
                           pl.BlockSpec((1, Cout, 1), lambda m: (m, 0, 0)))),
            compiler_params=cparams,
        )(patches, w2)

        # Fold training-mode BN into per-channel scale/shift ((Cout,)-sized XLA).
        # Note: E[y^2]-E[y]^2 in f32 with a 0-clamp; a shifted two-pass would be
        # safer for huge-mean activations but needs a third pass over y.
        inv_m = 1.0 / float(M)
        mean = jnp.sum(psum, axis=0) * inv_m                        # (Cout, 1)
        var = jnp.maximum(jnp.sum(psq, axis=0) * inv_m - mean * mean, 0.0)
        scale = g.reshape(Cout, 1) * jax.lax.rsqrt(var + BN_EPS)
        shift = bt.reshape(Cout, 1) - mean * scale

        # Pass 2: normalize + LeakyReLU on the stored pre-BN y ("parallel").
        y = pl.pallas_call(
            _bn_act_kernel,
            out_shape=jax.ShapeDtypeStruct((Cout, m_pad), out_dtype),
            grid_spec=pltpu.PrefetchScalarGridSpec(
                num_scalar_prefetch=0, grid=(grid_m,),
                in_specs=[pl.BlockSpec((Cout, tile_m), lambda m: (0, m)),
                          pl.BlockSpec((Cout, 1), lambda m: (0, 0)),
                          pl.BlockSpec((Cout, 1), lambda m: (0, 0))],
                out_specs=pl.BlockSpec((Cout, tile_m), lambda m: (0, m))),
            compiler_params=cparams,
        )(y_raw, scale, shift)

    if m_pad != M:
        y = y[:, :M]
    # Column order (n, ho, wo) -> directly the next layer's CNHW activation.
    return y.reshape(Cout, N, Ho, Wo)


def final_conv_xla(x_cnhw, w2, b):
    """Last layer: 4x4 s1 p0 conv to 1 channel.  A (1,K)x(K,N) GEMV padded to
    128 lanes is launch-dominated as a Pallas call, so use plain XLA dot."""
    pat, Ho, Wo = _im2col_cnhw(x_cnhw.astype(jnp.float32), 4, 1, 0)
    _, N, _, _ = x_cnhw.shape
    y = jnp.dot(w2.astype(jnp.float32), pat) + b[:, None]
    return y.reshape(1, N, Ho, Wo)


# ---------------------------------------------------------------------------
# Parameters (torch layout, then one-time reorder for the kernel)
# ---------------------------------------------------------------------------
def init_params(key, nch=3, nch_d=8):
    specs = [
        (nch_d, nch),
        (nch_d * 2, nch_d),
        (nch_d * 4, nch_d * 2),
        (nch_d * 8, nch_d * 4),
        (1, nch_d * 8),
    ]
    params = []
    for cout, cin in specs:
        key, wk = jax.random.split(key)
        w = 0.02 * jax.random.normal(wk, (cout, cin, 4, 4), jnp.float32)
        b = jnp.zeros((cout,), jnp.float32)
        g = jnp.ones((cout,), jnp.float32)    # BatchNorm weight default
        bt = jnp.zeros((cout,), jnp.float32)  # BatchNorm bias default
        params.append((w, b, g, bt))
    return params


def prepare_params(params):
    """torch (Cout,Cin,kh,kw) -> (Cout, kh*kw*Cin) bf16, matching im2col rows."""
    prepped = []
    for w, b, g, bt in params:
        cout = w.shape[0]
        w2 = w.transpose(0, 2, 3, 1).reshape(cout, -1).astype(jnp.bfloat16)
        prepped.append((w2, b, g, bt))
    return prepped


def discriminator_forward(x_nchw, prepped_params):
    # layer 0: conv s2 p1 + LeakyReLU
    # layers 1-3: conv s2 p1 + BatchNorm(train) + LeakyReLU (bias folded away)
    # layer 4: conv 4x4 s1 p0 -> 1 channel (XLA GEMV)
    x = x_nchw.transpose(1, 0, 2, 3).astype(jnp.bfloat16)   # NCHW -> CNHW, once
    cfgs = [
        dict(stride=2, pad=1, use_bn=False),
        dict(stride=2, pad=1, use_bn=True),
        dict(stride=2, pad=1, use_bn=True),
        dict(stride=2, pad=1, use_bn=True),
    ]
    for (w2, b, g, bt), cfg in zip(prepped_params[:4], cfgs):
        x = conv_layer(x, w2, b, g, bt, **cfg)
    w2, b, _, _ = prepped_params[4]
    x = final_conv_xla(x, w2, b)
    # x: (1, N, 1, 1) -> squeeze() like torch -> (N,)
    return jnp.squeeze(x)


if __name__ == "__main__":
    key = jax.random.PRNGKey(0)
    key, xk = jax.random.split(key)
    # Spatial size 64 is required by the architecture (64->32->16->8->4->1);
    # channels kept small (nch_d=8) for a quick synthetic run.
    N, nch, nch_d = 2, 3, 8
    x = jax.random.normal(xk, (N, nch, 64, 64), jnp.float32)
    params = prepare_params(init_params(key, nch=nch, nch_d=nch_d))

    fwd = jax.jit(lambda inp: discriminator_forward(inp, params))
    out = jax.block_until_ready(fwd(x))

    assert out.shape == (N,), out.shape
    assert bool(jnp.all(jnp.isfinite(out)))
    print("KERNEL_OK")
</pallas_src>

<mosaic_0001>
module attributes {stable_mosaic.version = 11 : i64} {
  func.func @_conv_bias_act_kernel(%arg0: i32, %arg1: memref<48x2048xbf16, #tpu.memory_space<vmem>>, %arg2: memref<8x48xbf16, #tpu.memory_space<vmem>>, %arg3: memref<8x1xf32, #tpu.memory_space<vmem>>, %arg4: memref<8x2048xbf16, #tpu.memory_space<vmem>>) attributes {dimension_semantics = [#tpu.dimension_semantics<parallel>], iteration_bounds = array<i64: 1>, scalar_prefetch = 0 : i64, scratch_operands = 0 : i64, tpu.core_type = #tpu.core_type<tc>, window_params = [{transform_indices = @transform_0, window_bounds = array<i64: 48, 2048>}, {pipeline_mode = #tpu.pipeline_mode<synchronous>, transform_indices = @transform_1, window_bounds = array<i64: 8, 48>}, {pipeline_mode = #tpu.pipeline_mode<synchronous>, transform_indices = @transform_2, window_bounds = array<i64: 8, 1>}, {transform_indices = @transform_3, window_bounds = array<i64: 8, 2048>}]} {
    %c0 = arith.constant 0 : index
    %c0_0 = arith.constant 0 : index
    %0 = vector.load %arg2[%c0, %c0_0] : memref<8x48xbf16, #tpu.memory_space<vmem>>, vector<8x48xbf16>
    %c0_1 = arith.constant 0 : index
    %c0_2 = arith.constant 0 : index
    %1 = vector.load %arg1[%c0_1, %c0_2] : memref<48x2048xbf16, #tpu.memory_space<vmem>>, vector<48x2048xbf16>
    %cst = arith.constant dense<0.000000e+00> : vector<8x2048xf32>
    %2 = tpu.matmul %0, %1, %cst {dimension_numbers = #tpu.dot_dimension_numbers<[1], [0], [0], [1], [0, 0, 1, 1], [], []>} : vector<8x48xbf16>, vector<48x2048xbf16>, vector<8x2048xf32> -> vector<8x2048xf32>
    %c0_3 = arith.constant 0 : index
    %c0_4 = arith.constant 0 : index
    %3 = vector.load %arg3[%c0_3, %c0_4] : memref<8x1xf32, #tpu.memory_space<vmem>>, vector<8x1xf32>
    %4 = vector.broadcast %3 : vector<8x1xf32> to vector<8x2048xf32>
    %5 = arith.addf %2, %4 : vector<8x2048xf32>
    %cst_5 = arith.constant 2.000000e-01 : f32
    %6 = vector.broadcast %cst_5 : f32 to vector<8x2048xf32>
    %7 = arith.mulf %6, %5 : vector<8x2048xf32>
    %8 = arith.maximumf %5, %7 : vector<8x2048xf32>
    %9 = arith.truncf %8 : vector<8x2048xf32> to vector<8x2048xbf16>
    %c0_6 = arith.constant 0 : index
    %c0_7 = arith.constant 0 : index
    %10 = vector.load %arg4[%c0_6, %c0_7] : memref<8x2048xbf16, #tpu.memory_space<vmem>>, vector<8x2048xbf16>
    tpu.vector_store %arg4[%c0_6, %c0_7], %9 {strides = array<i32>} : memref<8x2048xbf16, #tpu.memory_space<vmem>>, vector<8x2048xbf16>,
    return
  }
  func.func @transform_0(%arg0: i32) -> (i32, i32) {
    %c0_i32 = arith.constant 0 : i32
    %c0_i32_0 = arith.constant 0 : i32
    return %c0_i32, %arg0 : i32, i32
  }
  func.func @transform_1(%arg0: i32) -> (i32, i32) {
    %c0_i32 = arith.constant 0 : i32
    %c0_i32_0 = arith.constant 0 : i32
    %c0_i32_1 = arith.constant 0 : i32
    return %c0_i32, %c0_i32_0 : i32, i32
  }
  func.func @transform_2(%arg0: i32) -> (i32, i32) {
    %c0_i32 = arith.constant 0 : i32
    %c0_i32_0 = arith.constant 0 : i32
    %c0_i32_1 = arith.constant 0 : i32
    return %c0_i32, %c0_i32_0 : i32, i32
  }
  func.func @transform_3(%arg0: i32) -> (i32, i32) {
    %c0_i32 = arith.constant 0 : i32
    %c0_i32_0 = arith.constant 0 : i32
    return %c0_i32, %arg0 : i32, i32
  }
}

module attributes {stable_mosaic.version = 11 : i64} {
  func.func @_conv_stats_kernel(%arg0: i32, %arg1: memref<128x512xbf16, #tpu.memory_space<vmem>>, %arg2: memref<16x128xbf16, #tpu.memory_space<vmem>>, %arg3: memref<16x512xbf16, #tpu.memory_space<vmem>>, %arg4: memref<1x16x1xf32, #tpu.memory_space<vmem>>, %arg5: memref<1x16x1xf32, #tpu.memory_space<vmem>>) attributes {dimension_semantics = [#tpu.dimension_semantics<parallel>], iteration_bounds = array<i64: 1>, scalar_prefetch = 0 : i64, scratch_operands = 0 : i64, tpu.core_type = #tpu.core_type<tc>, window_params = [{transform_indices = @transform_0, window_bounds = array<i64: 128, 512>}, {pipeline_mode = #tpu.pipeline_mode<synchronous>, transform_indices = @transform_1, window_bounds = array<i64: 16, 128>}, {transform_indices = @transform_2, window_bounds = array<i64: 16, 512>}, {transform_indices = @transform_3, window_bounds = array<i64: 1, 16, 1>}, {transform_indices = @transform_4, window_bounds = array<i64: 1, 16, 1>}]} {
    %c0 = arith.constant 0 : index
    %c0_0 = arith.constant 0 : index
    %0 = vector.load %arg2[%c0, %c0_0] : memref<16x128xbf16, #tpu.memory_space<vmem>>, vector<16x128xbf16>
    %c0_1 = arith.constant 0 : index
    %c0_2 = arith.constant 0 : index
    %1 = vector.load %arg1[%c0_1, %c0_2] : memref<128x512xbf16, #tpu.memory_space<vmem>>, vector<128x512xbf16>
    %cst = arith.constant dense<0.000000e+00> : vector<16x512xf32>
    %2 = tpu.matmul %0, %1, %cst {dimension_numbers = #tpu.dot_dimension_numbers<[1], [0], [0], [1], [0, 0, 1, 1], [], []>} : vector<16x128xbf16>, vector<128x512xbf16>, vector<16x512xf32> -> vector<16x512xf32>
    %3 = arith.truncf %2 : vector<16x512xf32> to vector<16x512xbf16>
    %c0_3 = arith.constant 0 : index
    %c0_4 = arith.constant 0 : index
    %4 = vector.load %arg3[%c0_3, %c0_4] : memref<16x512xbf16, #tpu.memory_space<vmem>>, vector<16x512xbf16>
    tpu.vector_store %arg3[%c0_3, %c0_4], %3 {strides = array<i32>} : memref<16x512xbf16, #tpu.memory_space<vmem>>, vector<16x512xbf16>,
    %cst_5 = arith.constant dense<0.000000e+00> : vector<16xf32>
    %5 = vector.multi_reduction <add>, %2, %cst_5 [1] : vector<16x512xf32> to vector<16xf32>
    %6 = vector.shape_cast %5 : vector<16xf32> to vector<16x1xf32>
    %7 = vector.shape_cast %6 : vector<16x1xf32> to vector<1x16x1xf32>
    %c0_6 = arith.constant 0 : index
    %c0_7 = arith.constant 0 : index
    %c0_8 = arith.constant 0 : index
    %8 = vector.load %arg4[%c0_6, %c0_7, %c0_8] : memref<1x16x1xf32, #tpu.memory_space<vmem>>, vector<1x16x1xf32>
    tpu.vector_store %arg4[%c0_6, %c0_7, %c0_8], %7 {strides = array<i32>} : memref<1x16x1xf32, #tpu.memory_space<vmem>>, vector<1x16x1xf32>,
    %9 = arith.mulf %2, %2 : vector<16x512xf32>
    %cst_9 = arith.constant dense<0.000000e+00> : vector<16xf32>
    %10 = vector.multi_reduction <add>, %9, %cst_9 [1] : vector<16x512xf32> to vector<16xf32>
    %11 = vector.shape_cast %10 : vector<16xf32> to vector<16x1xf32>
    %12 = vector.shape_cast %11 : vector<16x1xf32> to vector<1x16x1xf32>
    %c0_10 = arith.constant 0 : index
    %c0_11 = arith.constant 0 : index
    %c0_12 = arith.constant 0 : index
    %13 = vector.load %arg5[%c0_10, %c0_11, %c0_12] : memref<1x16x1xf32, #tpu.memory_space<vmem>>, vector<1x16x1xf32>
    tpu.vector_store %arg5[%c0_10, %c0_11, %c0_12], %12 {strides = array<i32>} : memref<1x16x1xf32, #tpu.memory_space<vmem>>, vector<1x16x1xf32>,
    return
  }
  func.func @transform_0(%arg0: i32) -> (i32, i32) {
    %c0_i32 = arith.constant 0 : i32
    %c0_i32_0 = arith.constant 0 : i32
    return %c0_i32, %arg0 : i32, i32
  }
  func.func @transform_1(%arg0: i32) -> (i32, i32) {
    %c0_i32 = arith.constant 0 : i32
    %c0_i32_0 = arith.constant 0 : i32
    %c0_i32_1 = arith.constant 0 : i32
    return %c0_i32, %c0_i32_0 : i32, i32
  }
  func.func @transform_2(%arg0: i32) -> (i32, i32) {
    %c0_i32 = arith.constant 0 : i32
    %c0_i32_0 = arith.constant 0 : i32
    return %c0_i32, %arg0 : i32, i32
  }
  func.func @transform_3(%arg0: i32) -> (i32, i32, i32) {
    %c0_i32 = arith.constant 0 : i32
    %c0_i32_0 = arith.constant 0 : i32
    %c0_i32_1 = arith.constant 0 : i32
    return %arg0, %c0_i32, %c0_i32_0 : i32, i32, i32
  }
  func.func @transform_4(%arg0: i32) -> (i32, i32, i32) {
    %c0_i32 = arith.constant 0 : i32
    %c0_i32_0 = arith.constant 0 : i32
    %c0_i32_1 = arith.constant 0 : i32
    return %arg0, %c0_i32, %c0_i32_0 : i32, i32, i32
  }
}

module attributes {stable_mosaic.version = 11 : i64} {
  func.func @_bn_act_kernel(%arg0: i32, %arg1: memref<16x512xbf16, #tpu.memory_space<vmem>>, %arg2: memref<16x1xf32, #tpu.memory_space<vmem>>, %arg3: memref<16x1xf32, #tpu.memory_space<vmem>>, %arg4: memref<16x512xbf16, #tpu.memory_space<vmem>>) attributes {dimension_semantics = [#tpu.dimension_semantics<parallel>], iteration_bounds = array<i64: 1>, scalar_prefetch = 0 : i64, scratch_operands = 0 : i64, tpu.core_type = #tpu.core_type<tc>, window_params = [{transform_indices = @transform_0, window_bounds = array<i64: 16, 512>}, {pipeline_mode = #tpu.pipeline_mode<synchronous>, transform_indices = @transform_1, window_bounds = array<i64: 16, 1>}, {pipeline_mode = #tpu.pipeline_mode<synchronous>, transform_indices = @transform_2, window_bounds = array<i64: 16, 1>}, {transform_indices = @transform_3, window_bounds = array<i64: 16, 512>}]} {
    %c0 = arith.constant 0 : index
    %c0_0 = arith.constant 0 : index
    %0 = vector.load %arg1[%c0, %c0_0] : memref<16x512xbf16, #tpu.memory_space<vmem>>, vector<16x512xbf16>
    %1 = arith.extf %0 : vector<16x512xbf16> to vector<16x512xf32>
    %c0_1 = arith.constant 0 : index
    %c0_2 = arith.constant 0 : index
    %2 = vector.load %arg2[%c0_1, %c0_2] : memref<16x1xf32, #tpu.memory_space<vmem>>, vector<16x1xf32>
    %3 = vector.broadcast %2 : vector<16x1xf32> to vector<16x512xf32>
    %4 = arith.mulf %1, %3 : vector<16x512xf32>
    %c0_3 = arith.constant 0 : index
    %c0_4 = arith.constant 0 : index
    %5 = vector.load %arg3[%c0_3, %c0_4] : memref<16x1xf32, #tpu.memory_space<vmem>>, vector<16x1xf32>
    %6 = vector.broadcast %5 : vector<16x1xf32> to vector<16x512xf32>
    %7 = arith.addf %4, %6 : vector<16x512xf32>
    %cst = arith.constant 2.000000e-01 : f32
    %8 = vector.broadcast %cst : f32 to vector<16x512xf32>
    %9 = arith.mulf %8, %7 : vector<16x512xf32>
    %10 = arith.maximumf %7, %9 : vector<16x512xf32>
    %11 = arith.truncf %10 : vector<16x512xf32> to vector<16x512xbf16>
    %c0_5 = arith.constant 0 : index
    %c0_6 = arith.constant 0 : index
    %12 = vector.load %arg4[%c0_5, %c0_6] : memref<16x512xbf16, #tpu.memory_space<vmem>>, vector<16x512xbf16>
    tpu.vector_store %arg4[%c0_5, %c0_6], %11 {strides = array<i32>} : memref<16x512xbf16, #tpu.memory_space<vmem>>, vector<16x512xbf16>,
    return
  }
  func.func @transform_0(%arg0: i32) -> (i32, i32) {
    %c0_i32 = arith.constant 0 : i32
    %c0_i32_0 = arith.constant 0 : i32
    return %c0_i32, %arg0 : i32, i32
  }
  func.func @transform_1(%arg0: i32) -> (i32, i32) {
    %c0_i32 = arith.constant 0 : i32
    %c0_i32_0 = arith.constant 0 : i32
    %c0_i32_1 = arith.constant 0 : i32
    return %c0_i32, %c0_i32_0 : i32, i32
  }
  func.func @transform_2(%arg0: i32) -> (i32, i32) {
    %c0_i32 = arith.constant 0 : i32
    %c0_i32_0 = arith.constant 0 : i32
    %c0_i32_1 = arith.constant 0 : i32
    return %c0_i32, %c0_i32_0 : i32, i32
  }
  func.func @transform_3(%arg0: i32) -> (i32, i32) {
    %c0_i32 = arith.constant 0 : i32
    %c0_i32_0 = arith.constant 0 : i32
    return %c0_i32, %arg0 : i32, i32
  }
}

module attributes {stable_mosaic.version = 11 : i64} {
  func.func @_conv_stats_kernel(%arg0: i32, %arg1: memref<256x128xbf16, #tpu.memory_space<vmem>>, %arg2: memref<32x256xbf16, #tpu.memory_space<vmem>>, %arg3: memref<32x128xbf16, #tpu.memory_space<vmem>>, %arg4: memref<1x32x1xf32, #tpu.memory_space<vmem>>, %arg5: memref<1x32x1xf32, #tpu.memory_space<vmem>>) attributes {dimension_semantics = [#tpu.dimension_semantics<parallel>], iteration_bounds = array<i64: 1>, scalar_prefetch = 0 : i64, scratch_operands = 0 : i64, tpu.core_type = #tpu.core_type<tc>, window_params = [{transform_indices = @transform_0, window_bounds = array<i64: 256, 128>}, {pipeline_mode = #tpu.pipeline_mode<synchronous>, transform_indices = @transform_1, window_bounds = array<i64: 32, 256>}, {transform_indices = @transform_2, window_bounds = array<i64: 32, 128>}, {transform_indices = @transform_3, window_bounds = array<i64: 1, 32, 1>}, {transform_indices = @transform_4, window_bounds = array<i64: 1, 32, 1>}]} {
    %c0 = arith.constant 0 : index
    %c0_0 = arith.constant 0 : index
    %0 = vector.load %arg2[%c0, %c0_0] : memref<32x256xbf16, #tpu.memory_space<vmem>>, vector<32x256xbf16>
    %c0_1 = arith.constant 0 : index
    %c0_2 = arith.constant 0 : index
    %1 = vector.load %arg1[%c0_1, %c0_2] : memref<256x128xbf16, #tpu.memory_space<vmem>>, vector<256x128xbf16>
    %cst = arith.constant dense<0.000000e+00> : vector<32x128xf32>
    %2 = tpu.matmul %0, %1, %cst {dimension_numbers = #tpu.dot_dimension_numbers<[1], [0], [0], [1], [0, 0, 1, 1], [], []>} : vector<32x256xbf16>, vector<256x128xbf16>, vector<32x128xf32> -> vector<32x128xf32>
    %3 = arith.truncf %2 : vector<32x128xf32> to vector<32x128xbf16>
    %c0_3 = arith.constant 0 : index
    %c0_4 = arith.constant 0 : index
    %4 = vector.load %arg3[%c0_3, %c0_4] : memref<32x128xbf16, #tpu.memory_space<vmem>>, vector<32x128xbf16>
    tpu.vector_store %arg3[%c0_3, %c0_4], %3 {strides = array<i32>} : memref<32x128xbf16, #tpu.memory_space<vmem>>, vector<32x128xbf16>,
    %cst_5 = arith.constant dense<0.000000e+00> : vector<32xf32>
    %5 = vector.multi_reduction <add>, %2, %cst_5 [1] : vector<32x128xf32> to vector<32xf32>
    %6 = vector.shape_cast %5 : vector<32xf32> to vector<32x1xf32>
    %7 = vector.shape_cast %6 : vector<32x1xf32> to vector<1x32x1xf32>
    %c0_6 = arith.constant 0 : index
    %c0_7 = arith.constant 0 : index
    %c0_8 = arith.constant 0 : index
    %8 = vector.load %arg4[%c0_6, %c0_7, %c0_8] : memref<1x32x1xf32, #tpu.memory_space<vmem>>, vector<1x32x1xf32>
    tpu.vector_store %arg4[%c0_6, %c0_7, %c0_8], %7 {strides = array<i32>} : memref<1x32x1xf32, #tpu.memory_space<vmem>>, vector<1x32x1xf32>,
    %9 = arith.mulf %2, %2 : vector<32x128xf32>
    %cst_9 = arith.constant dense<0.000000e+00> : vector<32xf32>
    %10 = vector.multi_reduction <add>, %9, %cst_9 [1] : vector<32x128xf32> to vector<32xf32>
    %11 = vector.shape_cast %10 : vector<32xf32> to vector<32x1xf32>
    %12 = vector.shape_cast %11 : vector<32x1xf32> to vector<1x32x1xf32>
    %c0_10 = arith.constant 0 : index
    %c0_11 = arith.constant 0 : index
    %c0_12 = arith.constant 0 : index
    %13 = vector.load %arg5[%c0_10, %c0_11, %c0_12] : memref<1x32x1xf32, #tpu.memory_space<vmem>>, vector<1x32x1xf32>
    tpu.vector_store %arg5[%c0_10, %c0_11, %c0_12], %12 {strides = array<i32>} : memref<1x32x1xf32, #tpu.memory_space<vmem>>, vector<1x32x1xf32>,
    return
  }
  func.func @transform_0(%arg0: i32) -> (i32, i32) {
    %c0_i32 = arith.constant 0 : i32
    %c0_i32_0 = arith.constant 0 : i32
    return %c0_i32, %arg0 : i32, i32
  }
  func.func @transform_1(%arg0: i32) -> (i32, i32) {
    %c0_i32 = arith.constant 0 : i32
    %c0_i32_0 = arith.constant 0 : i32
    %c0_i32_1 = arith.constant 0 : i32
    return %c0_i32, %c0_i32_0 : i32, i32
  }
  func.func @transform_2(%arg0: i32) -> (i32, i32) {
    %c0_i32 = arith.constant 0 : i32
    %c0_i32_0 = arith.constant 0 : i32
    return %c0_i32, %arg0 : i32, i32
  }
  func.func @transform_3(%arg0: i32) -> (i32, i32, i32) {
    %c0_i32 = arith.constant 0 : i32
    %c0_i32_0 = arith.constant 0 : i32
    %c0_i32_1 = arith.constant 0 : i32
    return %arg0, %c0_i32, %c0_i32_0 : i32, i32, i32
  }
  func.func @transform_4(%arg0: i32) -> (i32, i32, i32) {
    %c0_i32 = arith.constant 0 : i32
    %c0_i32_0 = arith.constant 0 : i32
    %c0_i32_1 = arith.constant 0 : i32
    return %arg0, %c0_i32, %c0_i32_0 : i32, i32, i32
  }
}

module attributes {stable_mosaic.version = 11 : i64} {
  func.func @_bn_act_kernel(%arg0: i32, %arg1: memref<32x128xbf16, #tpu.memory_space<vmem>>, %arg2: memref<32x1xf32, #tpu.memory_space<vmem>>, %arg3: memref<32x1xf32, #tpu.memory_space<vmem>>, %arg4: memref<32x128xbf16, #tpu.memory_space<vmem>>) attributes {dimension_semantics = [#tpu.dimension_semantics<parallel>], iteration_bounds = array<i64: 1>, scalar_prefetch = 0 : i64, scratch_operands = 0 : i64, tpu.core_type = #tpu.core_type<tc>, window_params = [{transform_indices = @transform_0, window_bounds = array<i64: 32, 128>}, {pipeline_mode = #tpu.pipeline_mode<synchronous>, transform_indices = @transform_1, window_bounds = array<i64: 32, 1>}, {pipeline_mode = #tpu.pipeline_mode<synchronous>, transform_indices = @transform_2, window_bounds = array<i64: 32, 1>}, {transform_indices = @transform_3, window_bounds = array<i64: 32, 128>}]} {
    %c0 = arith.constant 0 : index
    %c0_0 = arith.constant 0 : index
    %0 = vector.load %arg1[%c0, %c0_0] : memref<32x128xbf16, #tpu.memory_space<vmem>>, vector<32x128xbf16>
    %1 = arith.extf %0 : vector<32x128xbf16> to vector<32x128xf32>
    %c0_1 = arith.constant 0 : index
    %c0_2 = arith.constant 0 : index
    %2 = vector.load %arg2[%c0_1, %c0_2] : memref<32x1xf32, #tpu.memory_space<vmem>>, vector<32x1xf32>
    %3 = vector.broadcast %2 : vector<32x1xf32> to vector<32x128xf32>
    %4 = arith.mulf %1, %3 : vector<32x128xf32>
    %c0_3 = arith.constant 0 : index
    %c0_4 = arith.constant 0 : index
    %5 = vector.load %arg3[%c0_3, %c0_4] : memref<32x1xf32, #tpu.memory_space<vmem>>, vector<32x1xf32>
    %6 = vector.broadcast %5 : vector<32x1xf32> to vector<32x128xf32>
    %7 = arith.addf %4, %6 : vector<32x128xf32>
    %cst = arith.constant 2.000000e-01 : f32
    %8 = vector.broadcast %cst : f32 to vector<32x128xf32>
    %9 = arith.mulf %8, %7 : vector<32x128xf32>
    %10 = arith.maximumf %7, %9 : vector<32x128xf32>
    %11 = arith.truncf %10 : vector<32x128xf32> to vector<32x128xbf16>
    %c0_5 = arith.constant 0 : index
    %c0_6 = arith.constant 0 : index
    %12 = vector.load %arg4[%c0_5, %c0_6] : memref<32x128xbf16, #tpu.memory_space<vmem>>, vector<32x128xbf16>
    tpu.vector_store %arg4[%c0_5, %c0_6], %11 {strides = array<i32>} : memref<32x128xbf16, #tpu.memory_space<vmem>>, vector<32x128xbf16>,
    return
  }
  func.func @transform_0(%arg0: i32) -> (i32, i32) {
    %c0_i32 = arith.constant 0 : i32
    %c0_i32_0 = arith.constant 0 : i32
    return %c0_i32, %arg0 : i32, i32
  }
  func.func @transform_1(%arg0: i32) -> (i32, i32) {
    %c0_i32 = arith.constant 0 : i32
    %c0_i32_0 = arith.constant 0 : i32
    %c0_i32_1 = arith.constant 0 : i32
    return %c0_i32, %c0_i32_0 : i32, i32
  }
  func.func @transform_2(%arg0: i32) -> (i32, i32) {
    %c0_i32 = arith.constant 0 : i32
    %c0_i32_0 = arith.constant 0 : i32
    %c0_i32_1 = arith.constant 0 : i32
    return %c0_i32, %c0_i32_0 : i32, i32
  }
  func.func @transform_3(%arg0: i32) -> (i32, i32) {
    %c0_i32 = arith.constant 0 : i32
    %c0_i32_0 = arith.constant 0 : i32
    return %c0_i32, %arg0 : i32, i32
  }
}

module attributes {stable_mosaic.version = 11 : i64} {
  func.func @_conv_stats_kernel(%arg0: i32, %arg1: memref<512x128xbf16, #tpu.memory_space<vmem>>, %arg2: memref<64x512xbf16, #tpu.memory_space<vmem>>, %arg3: memref<64x128xbf16, #tpu.memory_space<vmem>>, %arg4: memref<1x64x1xf32, #tpu.memory_space<vmem>>, %arg5: memref<1x64x1xf32, #tpu.memory_space<vmem>>) attributes {dimension_semantics = [#tpu.dimension_semantics<parallel>], iteration_bounds = array<i64: 1>, scalar_prefetch = 0 : i64, scratch_operands = 0 : i64, tpu.core_type = #tpu.core_type<tc>, window_params = [{transform_indices = @transform_0, window_bounds = array<i64: 512, 128>}, {pipeline_mode = #tpu.pipeline_mode<synchronous>, transform_indices = @transform_1, window_bounds = array<i64: 64, 512>}, {transform_indices = @transform_2, window_bounds = array<i64: 64, 128>}, {transform_indices = @transform_3, window_bounds = array<i64: 1, 64, 1>}, {transform_indices = @transform_4, window_bounds = array<i64: 1, 64, 1>}]} {
    %c0 = arith.constant 0 : index
    %c0_0 = arith.constant 0 : index
    %0 = vector.load %arg2[%c0, %c0_0] : memref<64x512xbf16, #tpu.memory_space<vmem>>, vector<64x512xbf16>
    %c0_1 = arith.constant 0 : index
    %c0_2 = arith.constant 0 : index
    %1 = vector.load %arg1[%c0_1, %c0_2] : memref<512x128xbf16, #tpu.memory_space<vmem>>, vector<512x128xbf16>
    %cst = arith.constant dense<0.000000e+00> : vector<64x128xf32>
    %2 = tpu.matmul %0, %1, %cst {dimension_numbers = #tpu.dot_dimension_numbers<[1], [0], [0], [1], [0, 0, 1, 1], [], []>} : vector<64x512xbf16>, vector<512x128xbf16>, vector<64x128xf32> -> vector<64x128xf32>
    %3 = arith.truncf %2 : vector<64x128xf32> to vector<64x128xbf16>
    %c0_3 = arith.constant 0 : index
    %c0_4 = arith.constant 0 : index
    %4 = vector.load %arg3[%c0_3, %c0_4] : memref<64x128xbf16, #tpu.memory_space<vmem>>, vector<64x128xbf16>
    tpu.vector_store %arg3[%c0_3, %c0_4], %3 {strides = array<i32>} : memref<64x128xbf16, #tpu.memory_space<vmem>>, vector<64x128xbf16>,
    %cst_5 = arith.constant dense<0.000000e+00> : vector<64xf32>
    %5 = vector.multi_reduction <add>, %2, %cst_5 [1] : vector<64x128xf32> to vector<64xf32>
    %6 = vector.shape_cast %5 : vector<64xf32> to vector<64x1xf32>
    %7 = vector.shape_cast %6 : vector<64x1xf32> to vector<1x64x1xf32>
    %c0_6 = arith.constant 0 : index
    %c0_7 = arith.constant 0 : index
    %c0_8 = arith.constant 0 : index
    %8 = vector.load %arg4[%c0_6, %c0_7, %c0_8] : memref<1x64x1xf32, #tpu.memory_space<vmem>>, vector<1x64x1xf32>
    tpu.vector_store %arg4[%c0_6, %c0_7, %c0_8], %7 {strides = array<i32>} : memref<1x64x1xf32, #tpu.memory_space<vmem>>, vector<1x64x1xf32>,
    %9 = arith.mulf %2, %2 : vector<64x128xf32>
    %cst_9 = arith.constant dense<0.000000e+00> : vector<64xf32>
    %10 = vector.multi_reduction <add>, %9, %cst_9 [1] : vector<64x128xf32> to vector<64xf32>
    %11 = vector.shape_cast %10 : vector<64xf32> to vector<64x1xf32>
    %12 = vector.shape_cast %11 : vector<64x1xf32> to vector<1x64x1xf32>
    %c0_10 = arith.constant 0 : index
    %c0_11 = arith.constant 0 : index
    %c0_12 = arith.constant 0 : index
    %13 = vector.load %arg5[%c0_10, %c0_11, %c0_12] : memref<1x64x1xf32, #tpu.memory_space<vmem>>, vector<1x64x1xf32>
    tpu.vector_store %arg5[%c0_10, %c0_11, %c0_12], %12 {strides = array<i32>} : memref<1x64x1xf32, #tpu.memory_space<vmem>>, vector<1x64x1xf32>,
    return
  }
  func.func @transform_0(%arg0: i32) -> (i32, i32) {
    %c0_i32 = arith.constant 0 : i32
    %c0_i32_0 = arith.constant 0 : i32
    return %c0_i32, %arg0 : i32, i32
  }
  func.func @transform_1(%arg0: i32) -> (i32, i32) {
    %c0_i32 = arith.constant 0 : i32
    %c0_i32_0 = arith.constant 0 : i32
    %c0_i32_1 = arith.constant 0 : i32
    return %c0_i32, %c0_i32_0 : i32, i32
  }
  func.func @transform_2(%arg0: i32) -> (i32, i32) {
    %c0_i32 = arith.constant 0 : i32
    %c0_i32_0 = arith.constant 0 : i32
    return %c0_i32, %arg0 : i32, i32
  }
  func.func @transform_3(%arg0: i32) -> (i32, i32, i32) {
    %c0_i32 = arith.constant 0 : i32
    %c0_i32_0 = arith.constant 0 : i32
    %c0_i32_1 = arith.constant 0 : i32
    return %arg0, %c0_i32, %c0_i32_0 : i32, i32, i32
  }
  func.func @transform_4(%arg0: i32) -> (i32, i32, i32) {
    %c0_i32 = arith.constant 0 : i32
    %c0_i32_0 = arith.constant 0 : i32
    %c0_i32_1 = arith.constant 0 : i32
    return %arg0, %c0_i32, %c0_i32_0 : i32, i32, i32
  }
}

module attributes {stable_mosaic.version = 11 : i64} {
  func.func @_bn_act_kernel(%arg0: i32, %arg1: memref<64x128xbf16, #tpu.memory_space<vmem>>, %arg2: memref<64x1xf32, #tpu.memory_space<vmem>>, %arg3: memref<64x1xf32, #tpu.memory_space<vmem>>, %arg4: memref<64x128xbf16, #tpu.memory_space<vmem>>) attributes {dimension_semantics = [#tpu.dimension_semantics<parallel>], iteration_bounds = array<i64: 1>, scalar_prefetch = 0 : i64, scratch_operands = 0 : i64, tpu.core_type = #tpu.core_type<tc>, window_params = [{transform_indices = @transform_0, window_bounds = array<i64: 64, 128>}, {pipeline_mode = #tpu.pipeline_mode<synchronous>, transform_indices = @transform_1, window_bounds = array<i64: 64, 1>}, {pipeline_mode = #tpu.pipeline_mode<synchronous>, transform_indices = @transform_2, window_bounds = array<i64: 64, 1>}, {transform_indices = @transform_3, window_bounds = array<i64: 64, 128>}]} {
    %c0 = arith.constant 0 : index
    %c0_0 = arith.constant 0 : index
    %0 = vector.load %arg1[%c0, %c0_0] : memref<64x128xbf16, #tpu.memory_space<vmem>>, vector<64x128xbf16>
    %1 = arith.extf %0 : vector<64x128xbf16> to vector<64x128xf32>
    %c0_1 = arith.constant 0 : index
    %c0_2 = arith.constant 0 : index
    %2 = vector.load %arg2[%c0_1, %c0_2] : memref<64x1xf32, #tpu.memory_space<vmem>>, vector<64x1xf32>
    %3 = vector.broadcast %2 : vector<64x1xf32> to vector<64x128xf32>
    %4 = arith.mulf %1, %3 : vector<64x128xf32>
    %c0_3 = arith.constant 0 : index
    %c0_4 = arith.constant 0 : index
    %5 = vector.load %arg3[%c0_3, %c0_4] : memref<64x1xf32, #tpu.memory_space<vmem>>, vector<64x1xf32>
    %6 = vector.broadcast %5 : vector<64x1xf32> to vector<64x128xf32>
    %7 = arith.addf %4, %6 : vector<64x128xf32>
    %cst = arith.constant 2.000000e-01 : f32
    %8 = vector.broadcast %cst : f32 to vector<64x128xf32>
    %9 = arith.mulf %8, %7 : vector<64x128xf32>
    %10 = arith.maximumf %7, %9 : vector<64x128xf32>
    %11 = arith.truncf %10 : vector<64x128xf32> to vector<64x128xbf16>
    %c0_5 = arith.constant 0 : index
    %c0_6 = arith.constant 0 : index
    %12 = vector.load %arg4[%c0_5, %c0_6] : memref<64x128xbf16, #tpu.memory_space<vmem>>, vector<64x128xbf16>
    tpu.vector_store %arg4[%c0_5, %c0_6], %11 {strides = array<i32>} : memref<64x128xbf16, #tpu.memory_space<vmem>>, vector<64x128xbf16>,
    return
  }
  func.func @transform_0(%arg0: i32) -> (i32, i32) {
    %c0_i32 = arith.constant 0 : i32
    %c0_i32_0 = arith.constant 0 : i32
    return %c0_i32, %arg0 : i32, i32
  }
  func.func @transform_1(%arg0: i32) -> (i32, i32) {
    %c0_i32 = arith.constant 0 : i32
    %c0_i32_0 = arith.constant 0 : i32
    %c0_i32_1 = arith.constant 0 : i32
    return %c0_i32, %c0_i32_0 : i32, i32
  }
  func.func @transform_2(%arg0: i32) -> (i32, i32) {
    %c0_i32 = arith.constant 0 : i32
    %c0_i32_0 = arith.constant 0 : i32
    %c0_i32_1 = arith.constant 0 : i32
    return %c0_i32, %c0_i32_0 : i32, i32
  }
  func.func @transform_3(%arg0: i32) -> (i32, i32) {
    %c0_i32 = arith.constant 0 : i32
    %c0_i32_0 = arith.constant 0 : i32
    return %c0_i32, %arg0 : i32, i32
  }
}

</mosaic_0001>

<llo_original>
// kernel: _lambda_.7
$region0: #{_lambda_.7}
  #allocation0 [shape = 'u32[]', space=smem, size = 0x4, offset = 0x4, fixed_abs, tag = 'smem constant byte address 0x4 - core index']
  #allocation1 [shape = 'u32[144,128]{1,0:T(1,128)}', space=vmem, size = 0x12000, scoped, tag = 'internal scratch']
  %s0 = inlined_call_operand.vmem [shape: bf16[48,2048], index: 0, kind: input, shape index: {}]
  %s1 = inlined_call_operand.vmem [shape: bf16[8,48], index: 1, kind: input, shape index: {}]
  %s2 = inlined_call_operand.vmem [shape: f32[8,1], index: 2, kind: input, shape index: {}]
  %s3 = inlined_call_operand.vmem [shape: bf16[8,2048], index: 3, kind: output, shape index: {}]
  %s4 = sld [smem:[#allocation0]]
  $region22: #{_lambda_.7} parent=0
    _
  %s6 = ssub.s32 1, %s4
  %s7 = scalar_select 0, %s6, %s4
  // Predicated region
  $region2: #{_lambda_.7} parent=0 // pred_check
    _
  $region3: #{_lambda_.7} parent=0 // pred_check_branch
    %9 = sbr.rel (0) target = $region5
  $region4: #{_lambda_.7} parent=0 // pred_region
    _
  $region5: #{_lambda_.7} parent=0 // pred_fallthru
    _
  // Predicated region
  $region6: #{_lambda_.7} parent=0 // pred_check
    _
  $region7: #{_lambda_.7} parent=0 // pred_check_branch
    %11 = sbr.rel (0) target = $region9
  $region8: #{_lambda_.7} parent=0 // pred_region
    _
  $region9: #{_lambda_.7} parent=0 // pred_fallthru
    _
  // Predicated region
  $region10: #{_lambda_.7} parent=0 // pred_check
    _
  $region11: #{_lambda_.7} parent=0 // pred_check_branch
    %13 = sbr.rel (0) target = $region13
  $region12: #{_lambda_.7} parent=0 // pred_region
    _
  $region13: #{_lambda_.7} parent=0 // pred_fallthru
    _
  %v15 = vld [vmem:[%s1] sm:$0xf]
  %v16 = vld [vmem:[%s0] sm:$0xff]
  %v17 = vld [vmem:[%s0 + $0x8] sm:$0xff]
  %v18 = vld [vmem:[%s0 + $0x10] sm:$0xff]
  %v19 = vld [vmem:[%s0 + $0x18] sm:$0xff]
  %v20 = vld [vmem:[%s0 + $0x20] sm:$0xff]
  %v21 = vld [vmem:[%s0 + $0x28] sm:$0xff]
  %v22 = vld [vmem:[%s0 + $0x30] sm:$0xff]
  %v23 = vld [vmem:[%s0 + $0x38] sm:$0xff]
  %v24 = vld [vmem:[%s0 + $0x40] sm:$0xff]
  %v25 = vld [vmem:[%s0 + $0x48] sm:$0xff]
  %v26 = vld [vmem:[%s0 + $0x50] sm:$0xff]
  %v27 = vld [vmem:[%s0 + $0x58] sm:$0xff]
  %v28 = vld [vmem:[%s0 + $0x60] sm:$0xff]
  %v29 = vld [vmem:[%s0 + $0x68] sm:$0xff]
  %v30 = vld [vmem:[%s0 + $0x70] sm:$0xff]
  %v31 = vld [vmem:[%s0 + $0x78] sm:$0xff]
  %v32 = vld [vmem:[%s0 + $0x80] sm:$0xff]
  %v33 = vld [vmem:[%s0 + $0x88] sm:$0xff]
  %v34 = vld [vmem:[%s0 + $0x90] sm:$0xff]
  %v35 = vld [vmem:[%s0 + $0x98] sm:$0xff]
  %v36 = vld [vmem:[%s0 + $0xa0] sm:$0xff]
  %v37 = vld [vmem:[%s0 + $0xa8] sm:$0xff]
  %v38 = vld [vmem:[%s0 + $0xb0] sm:$0xff]
  %v39 = vld [vmem:[%s0 + $0xb8] sm:$0xff]
  %v40 = vld [vmem:[%s0 + $0xc0] sm:$0xff]
  %v41 = vld [vmem:[%s0 + $0xc8] sm:$0xff]
  %v42 = vld [vmem:[%s0 + $0xd0] sm:$0xff]
  %v43 = vld [vmem:[%s0 + $0xd8] sm:$0xff]
  %v44 = vld [vmem:[%s0 + $0xe0] sm:$0xff]
  %v45 = vld [vmem:[%s0 + $0xe8] sm:$0xff]
  %v46 = vld [vmem:[%s0 + $0xf0] sm:$0xff]
  %v47 = vld [vmem:[%s0 + $0xf8] sm:$0xff]
  %v48 = vld [vmem:[%s0 + $0x100] sm:$0xff]
  %v49 = vld [vmem:[%s0 + $0x108] sm:$0xff]
  %v50 = vld [vmem:[%s0 + $0x110] sm:$0xff]
  %v51 = vld [vmem:[%s0 + $0x118] sm:$0xff]
  %v52 = vld [vmem:[%s0 + $0x120] sm:$0xff]
  %v53 = vld [vmem:[%s0 + $0x128] sm:$0xff]
  %v54 = vld [vmem:[%s0 + $0x130] sm:$0xff]
  %v55 = vld [vmem:[%s0 + $0x138] sm:$0xff]
  %v56 = vld [vmem:[%s0 + $0x140] sm:$0xff]
  %v57 = vld [vmem:[%s0 + $0x148] sm:$0xff]
  %v58 = vld [vmem:[%s0 + $0x150] sm:$0xff]
  %v59 = vld [vmem:[%s0 + $0x158] sm:$0xff]
  %v60 = vld [vmem:[%s0 + $0x160] sm:$0xff]
  %v61 = vld [vmem:[%s0 + $0x168] sm:$0xff]
  %v62 = vld [vmem:[%s0 + $0x170] sm:$0xff]
  %v63 = vld [vmem:[%s0 + $0x178] sm:$0xff]
  %v64 = vld [vmem:[%s2] sm:$0xff]
  %66 = vset.pattern.permute.xlu0 0
  %67 = vperm.xlu0 %66, %v64
  %v68 = vpop.permute.xlu0 %67
  %v118 = vunpack.c.l.b16 %v16
  %v119 = vunpack.c.h.b16 %v16
  %v120 = vunpack.c.l.b16 %v17
  %v121 = vunpack.c.h.b16 %v17
  %v122 = vunpack.c.l.b16 %v18
  %v123 = vunpack.c.h.b16 %v18
  %v124 = vunpack.c.l.b16 %v19
  %v125 = vunpack.c.h.b16 %v19
  %v126 = vunpack.c.l.b16 %v20
  %v127 = vunpack.c.h.b16 %v20
  %v128 = vunpack.c.l.b16 %v21
  %v129 = vunpack.c.h.b16 %v21
  %v130 = vunpack.c.l.b16 %v22
  %v131 = vunpack.c.h.b16 %v22
  %v132 = vunpack.c.l.b16 %v23
  %v133 = vunpack.c.h.b16 %v23
  %v134 = vunpack.c.l.b16 %v24
  %v135 = vunpack.c.h.b16 %v24
  %v136 = vunpack.c.l.b16 %v25
  %v137 = vunpack.c.h.b16 %v25
  %v138 = vunpack.c.l.b16 %v26
  %v139 = vunpack.c.h.b16 %v26
  %v140 = vunpack.c.l.b16 %v27
  %v141 = vunpack.c.h.b16 %v27
  %v142 = vunpack.c.l.b16 %v28
  %v143 = vunpack.c.h.b16 %v28
  %v144 = vunpack.c.l.b16 %v29
  %v145 = vunpack.c.h.b16 %v29
  %v146 = vunpack.c.l.b16 %v30
  %v147 = vunpack.c.h.b16 %v30
  %v148 = vunpack.c.l.b16 %v31
  %v149 = vunpack.c.h.b16 %v31
  %v150 = vunpack.c.l.b16 %v32
  %v151 = vunpack.c.h.b16 %v32
  %v152 = vunpack.c.l.b16 %v33
  %v153 = vunpack.c.h.b16 %v33
  %v154 = vunpack.c.l.b16 %v34
  %v155 = vunpack.c.h.b16 %v34
  %v156 = vunpack.c.l.b16 %v35
  %v157 = vunpack.c.h.b16 %v35
  %v158 = vunpack.c.l.b16 %v36
  %v159 = vunpack.c.h.b16 %v36
  %v160 = vunpack.c.l.b16 %v37
  %v161 = vunpack.c.h.b16 %v37
  %v162 = vunpack.c.l.b16 %v38
  %v163 = vunpack.c.h.b16 %v38
  %v164 = vunpack.c.l.b16 %v39
  %v165 = vunpack.c.h.b16 %v39
  %v166 = vunpack.c.l.b16 %v40
  %v167 = vunpack.c.h.b16 %v40
  %v168 = vunpack.c.l.b16 %v41
  %v169 = vunpack.c.h.b16 %v41
  %v170 = vunpack.c.l.b16 %v42
  %v171 = vunpack.c.h.b16 %v42
  %v172 = vunpack.c.l.b16 %v43
  %v173 = vunpack.c.h.b16 %v43
  %v174 = vunpack.c.l.b16 %v44
  %v175 = vunpack.c.h.b16 %v44
  %v176 = vunpack.c.l.b16 %v45
  %v177 = vunpack.c.h.b16 %v45
  %v178 = vunpack.c.l.b16 %v46
  %v179 = vunpack.c.h.b16 %v46
  %v180 = vunpack.c.l.b16 %v47
  %v181 = vunpack.c.h.b16 %v47
  %v182 = vunpack.c.l.b16 %v48
  %v183 = vunpack.c.h.b16 %v48
  %v184 = vunpack.c.l.b16 %v49
  %v185 = vunpack.c.h.b16 %v49
  %v186 = vunpack.c.l.b16 %v50
  %v187 = vunpack.c.h.b16 %v50
  %v188 = vunpack.c.l.b16 %v51
  %v189 = vunpack.c.h.b16 %v51
  %v190 = vunpack.c.l.b16 %v52
  %v191 = vunpack.c.h.b16 %v52
  %v192 = vunpack.c.l.b16 %v53
  %v193 = vunpack.c.h.b16 %v53
  %v194 = vunpack.c.l.b16 %v54
  %v195 = vunpack.c.h.b16 %v54
  %v196 = vunpack.c.l.b16 %v55
  %v197 = vunpack.c.h.b16 %v55
  %v198 = vunpack.c.l.b16 %v56
  %v199 = vunpack.c.h.b16 %v56
  %v200 = vunpack.c.l.b16 %v57
  %v201 = vunpack.c.h.b16 %v57
  %v202 = vunpack.c.l.b16 %v58
  %v203 = vunpack.c.h.b16 %v58
  %v204 = vunpack.c.l.b16 %v59
  %v205 = vunpack.c.h.b16 %v59
  %v206 = vunpack.c.l.b16 %v60
  %v207 = vunpack.c.h.b16 %v60
  %v208 = vunpack.c.l.b16 %v61
  %v209 = vunpack.c.h.b16 %v61
  %v210 = vunpack.c.l.b16 %v62
  %v211 = vunpack.c.h.b16 %v62
  %v212 = vunpack.c.l.b16 %v63
  %v213 = vunpack.c.h.b16 %v63
  %v214 = vpack.c.b16 %v134, %v118
  %v215 = vpack.c.b16 %v135, %v119
  %v216 = vpack.c.b16 %v136, %v120
  %v217 = vpack.c.b16 %v137, %v121
  %v218 = vpack.c.b16 %v138, %v122
  %v219 = vpack.c.b16 %v139, %v123
  %v220 = vpack.c.b16 %v140, %v124
  %v221 = vpack.c.b16 %v141, %v125
  %v222 = vpack.c.b16 %v142, %v126
  %v223 = vpack.c.b16 %v143, %v127
  %v224 = vpack.c.b16 %v144, %v128
  %v225 = vpack.c.b16 %v145, %v129
  %v226 = vpack.c.b16 %v146, %v130
  %v227 = vpack.c.b16 %v147, %v131
  %v228 = vpack.c.b16 %v148, %v132
  %v229 = vpack.c.b16 %v149, %v133
  %v230 = vpack.c.b16 %v166, %v150
  %v231 = vpack.c.b16 %v167, %v151
  %v232 = vpack.c.b16 %v168, %v152
  %v233 = vpack.c.b16 %v169, %v153
  %v234 = vpack.c.b16 %v170, %v154
  %v235 = vpack.c.b16 %v171, %v155
  %v236 = vpack.c.b16 %v172, %v156
  %v237 = vpack.c.b16 %v173, %v157
  %v238 = vpack.c.b16 %v174, %v158
  %v239 = vpack.c.b16 %v175, %v159
  %v240 = vpack.c.b16 %v176, %v160
  %v241 = vpack.c.b16 %v177, %v161
  %v242 = vpack.c.b16 %v178, %v162
  %v243 = vpack.c.b16 %v179, %v163
  %v244 = vpack.c.b16 %v180, %v164
  %v245 = vpack.c.b16 %v181, %v165
  %v246 = vpack.c.b16 %v198, %v182
  %v247 = vpack.c.b16 %v199, %v183
  %v248 = vpack.c.b16 %v200, %v184
  %v249 = vpack.c.b16 %v201, %v185
  %v250 = vpack.c.b16 %v202, %v186
  %v251 = vpack.c.b16 %v203, %v187
  %v252 = vpack.c.b16 %v204, %v188
  %v253 = vpack.c.b16 %v205, %v189
  %v254 = vpack.c.b16 %v206, %v190
  %v255 = vpack.c.b16 %v207, %v191
  %v256 = vpack.c.b16 %v208, %v192
  %v257 = vpack.c.b16 %v209, %v193
  %v258 = vpack.c.b16 %v210, %v194
  %v259 = vpack.c.b16 %v211, %v195
  %v260 = vpack.c.b16 %v212, %v196
  %v261 = vpack.c.b16 %v213, %v197
  %vm310 = vcmask 392192
  %v312 = vsel %vm310, %v15, 0
  %314 = vmatprep.subr.bf16.mxu0 0
  %315 = vmatpush1.bf16.msra.mxu0 0
  %316 = vmatprep.subr.bf16.mxu0 0
  %317 = vmatpush1.bf16.msra.mxu0 0
  %318 = vmatprep.subr.bf16.mxu0 0
  %319 = vmatpush1.bf16.msra.mxu0 0
  %320 = vmatprep.subr.bf16.mxu0 0
  %321 = vmatpush1.bf16.msra.mxu0 0
  %322 = vmatprep.subr.bf16.mxu0 0
  %323 = vmatpush1.bf16.msra.mxu0 0
  %324 = vmatprep.subr.bf16.mxu0 %v247
  %325 = vmatpush1.bf16.msra.mxu0 %v246
  %326 = vmatprep.subr.bf16.mxu0 %v231
  %327 = vmatpush1.bf16.msra.mxu0 %v230
  %328 = vmatprep.subr.bf16.mxu0 %v215
  %329 = vmatpush1.bf16.msra.mxu0 %v214
  %330 = vmatprep.subr.bf16.mxu0 0
  %331 = vmatpush2.bf16.msra.mxu0 0
  %332 = vmatprep.subr.bf16.mxu0 0
  %333 = vmatpush2.bf16.msra.mxu0 0
  %334 = vmatprep.subr.bf16.mxu0 0
  %335 = vmatpush2.bf16.msra.mxu0 0
  %336 = vmatprep.subr.bf16.mxu0 0
  %337 = vmatpush2.bf16.msra.mxu0 0
  %338 = vmatprep.subr.bf16.mxu0 0
  %339 = vmatpush2.bf16.msra.mxu0 0
  %340 = vmatprep.subr.bf16.mxu0 0
  %341 = vmatpush2.bf16.msra.mxu0 0
  %342 = vmatprep.subr.bf16.mxu0 0
  %343 = vmatpush2.bf16.msra.mxu0 0
  %344 = vmatprep.subr.bf16.mxu0 0
  %345 = vmatpush2.bf16.msra.mxu0 0
  %346 = vmatprep.mubr.bf16.mxu0 0
  %347 = vmatmul.mubr.bf16.gmra.mxu0 %v312
  %v348 = vpop.f32.mrf.mxu0
  %v349 = vadd.f32 %v68, %v348
  %v350 = vpop.f32.mrf.mxu0
  %v351 = vadd.f32 %v68, %v350
  %v352 = vpop.f32.mrf.mxu0
  %v353 = vpop.f32.mrf.mxu0
  %354 = vdwg.mxu0
  %355 = vmatprep.subr.bf16.mxu0 0
  %356 = vmatpush1.bf16.msra.mxu0 0
  %357 = vmatprep.subr.bf16.mxu0 0
  %358 = vmatpush1.bf16.msra.mxu0 0
  %359 = vmatprep.subr.bf16.mxu0 0
  %360 = vmatpush1.bf16.msra.mxu0 0
  %361 = vmatprep.subr.bf16.mxu0 0
  %362 = vmatpush1.bf16.msra.mxu0 0
  %363 = vmatprep.subr.bf16.mxu0 0
  %364 = vmatpush1.bf16.msra.mxu0 0
  %365 = vmatprep.subr.bf16.mxu0 %v249
  %366 = vmatpush1.bf16.msra.mxu0 %v248
  %367 = vmatprep.subr.bf16.mxu0 %v233
  %368 = vmatpush1.bf16.msra.mxu0 %v232
  %369 = vmatprep.subr.bf16.mxu0 %v217
  %370 = vmatpush1.bf16.msra.mxu0 %v216
  %371 = vmatprep.subr.bf16.mxu0 0
  %372 = vmatpush2.bf16.msra.mxu0 0
  %373 = vmatprep.subr.bf16.mxu0 0
  %374 = vmatpush2.bf16.msra.mxu0 0
  %375 = vmatprep.subr.bf16.mxu0 0
  %376 = vmatpush2.bf16.msra.mxu0 0
  %377 = vmatprep.subr.bf16.mxu0 0
  %378 = vmatpush2.bf16.msra.mxu0 0
  %379 = vmatprep.subr.bf16.mxu0 0
  %380 = vmatpush2.bf16.msra.mxu0 0
  %381 = vmatprep.subr.bf16.mxu0 0
  %382 = vmatpush2.bf16.msra.mxu0 0
  %383 = vmatprep.subr.bf16.mxu0 0
  %384 = vmatpush2.bf16.msra.mxu0 0
  %385 = vmatprep.subr.bf16.mxu0 0
  %386 = vmatpush2.bf16.msra.mxu0 0
  %387 = vmatprep.mubr.bf16.mxu0 0
  %388 = vmatmul.mubr.bf16.gmra.mxu0 %v312
  %v389 = vpop.f32.mrf.mxu0
  %v390 = vadd.f32 %v68, %v389
  %v391 = vpop.f32.mrf.mxu0
  %v392 = vadd.f32 %v68, %v391
  %v393 = vpop.f32.mrf.mxu0
  %v394 = vpop.f32.mrf.mxu0
  %395 = vdwg.mxu0
  %396 = vmatprep.subr.bf16.mxu0 0
  %397 = vmatpush1.bf16.msra.mxu0 0
  %398 = vmatprep.subr.bf16.mxu0 0
  %399 = vmatpush1.bf16.msra.mxu0 0
  %400 = vmatprep.subr.bf16.mxu0 0
  %401 = vmatpush1.bf16.msra.mxu0 0
  %402 = vmatprep.subr.bf16.mxu0 0
  %403 = vmatpush1.bf16.msra.mxu0 0
  %404 = vmatprep.subr.bf16.mxu0 0
  %405 = vmatpush1.bf16.msra.mxu0 0
  %406 = vmatprep.subr.bf16.mxu0 %v251
  %407 = vmatpush1.bf16.msra.mxu0 %v250
  %408 = vmatprep.subr.bf16.mxu0 %v235
  %409 = vmatpush1.bf16.msra.mxu0 %v234
  %410 = vmatprep.subr.bf16.mxu0 %v219
  %411 = vmatpush1.bf16.msra.mxu0 %v218
  %412 = vmatprep.subr.bf16.mxu0 0
  %413 = vmatpush2.bf16.msra.mxu0 0
  %414 = vmatprep.subr.bf16.mxu0 0
  %415 = vmatpush2.bf16.msra.mxu0 0
  %416 = vmatprep.subr.bf16.mxu0 0
  %417 = vmatpush2.bf16.msra.mxu0 0
  %418 = vmatprep.subr.bf16.mxu0 0
  %419 = vmatpush2.bf16.msra.mxu0 0
  %420 = vmatprep.subr.bf16.mxu0 0
  %421 = vmatpush2.bf16.msra.mxu0 0
  %422 = vmatprep.subr.bf16.mxu0 0
  %423 = vmatpush2.bf16.msra.mxu0 0
  %424 = vmatprep.subr.bf16.mxu0 0
  %425 = vmatpush2.bf16.msra.mxu0 0
  %426 = vmatprep.subr.bf16.mxu0 0
  %427 = vmatpush2.bf16.msra.mxu0 0
  %428 = vmatprep.mubr.bf16.mxu0 0
  %429 = vmatmul.mubr.bf16.gmra.mxu0 %v312
  %v430 = vpop.f32.mrf.mxu0
  %v431 = vadd.f32 %v68, %v430
  %v432 = vpop.f32.mrf.mxu0
  %v433 = vadd.f32 %v68, %v432
  %v434 = vpop.f32.mrf.mxu0
  %v435 = vpop.f32.mrf.mxu0
  %436 = vdwg.mxu0
  %437 = vmatprep.subr.bf16.mxu0 0
  %438 = vmatpush1.bf16.msra.mxu0 0
  %439 = vmatprep.subr.bf16.mxu0 0
  %440 = vmatpush1.bf16.msra.mxu0 0
  %441 = vmatprep.subr.bf16.mxu0 0
  %442 = vmatpush1.bf16.msra.mxu0 0
  %443 = vmatprep.subr.bf16.mxu0 0
  %444 = vmatpush1.bf16.msra.mxu0 0
  %445 = vmatprep.subr.bf16.mxu0 0
  %446 = vmatpush1.bf16.msra.mxu0 0
  %447 = vmatprep.subr.bf16.mxu0 %v253
  %448 = vmatpush1.bf16.msra.mxu0 %v252
  %449 = vmatprep.subr.bf16.mxu0 %v237
  %450 = vmatpush1.bf16.msra.mxu0 %v236
  %451 = vmatprep.subr.bf16.mxu0 %v221
  %452 = vmatpush1.bf16.msra.mxu0 %v220
  %453 = vmatprep.subr.bf16.mxu0 0
  %454 = vmatpush2.bf16.msra.mxu0 0
  %455 = vmatprep.subr.bf16.mxu0 0
  %456 = vmatpush2.bf16.msra.mxu0 0
  %457 = vmatprep.subr.bf16.mxu0 0
  %458 = vmatpush2.bf16.msra.mxu0 0
  %459 = vmatprep.subr.bf16.mxu0 0
  %460 = vmatpush2.bf16.msra.mxu0 0
  %461 = vmatprep.subr.bf16.mxu0 0
  %462 = vmatpush2.bf16.msra.mxu0 0
  %463 = vmatprep.subr.bf16.mxu0 0
  %464 = vmatpush2.bf16.msra.mxu0 0
  %465 = vmatprep.subr.bf16.mxu0 0
  %466 = vmatpush2.bf16.msra.mxu0 0
  %467 = vmatprep.subr.bf16.mxu0 0
  %468 = vmatpush2.bf16.msra.mxu0 0
  %469 = vmatprep.mubr.bf16.mxu0 0
  %470 = vmatmul.mubr.bf16.gmra.mxu0 %v312
  %v471 = vpop.f32.mrf.mxu0
  %v472 = vadd.f32 %v68, %v471
  %v473 = vpop.f32.mrf.mxu0
  %v474 = vadd.f32 %v68, %v473
  %v475 = vpop.f32.mrf.mxu0
  %v476 = vpop.f32.mrf.mxu0
  %477 = vdwg.mxu0
  %478 = vmatprep.subr.bf16.mxu0 0
  %479 = vmatpush1.bf16.msra.mxu0 0
  %480 = vmatprep.subr.bf16.mxu0 0
  %481 = vmatpush1.bf16.msra.mxu0 0
  %482 = vmatprep.subr.bf16.mxu0 0
  %483 = vmatpush1.bf16.msra.mxu0 0
  %484 = vmatprep.subr.bf16.mxu0 0
  %485 = vmatpush1.bf16.msra.mxu0 0
  %486 = vmatprep.subr.bf16.mxu0 0
  %487 = vmatpush1.bf16.msra.mxu0 0
  %488 = vmatprep.subr.bf16.mxu0 %v255
  %489 = vmatpush1.bf16.msra.mxu0 %v254
  %490 = vmatprep.subr.bf16.mxu0 %v239
  %491 = vmatpush1.bf16.msra.mxu0 %v238
  %492 = vmatprep.subr.bf16.mxu0 %v223
  %493 = vmatpush1.bf16.msra.mxu0 %v222
  %494 = vmatprep.subr.bf16.mxu0 0
  %495 = vmatpush2.bf16.msra.mxu0 0
  %496 = vmatprep.subr.bf16.mxu0 0
  %497 = vmatpush2.bf16.msra.mxu0 0
  %498 = vmatprep.subr.bf16.mxu0 0
  %499 = vmatpush2.bf16.msra.mxu0 0
  %500 = vmatprep.subr.bf16.mxu0 0
  %501 = vmatpush2.bf16.msra.mxu0 0
  %502 = vmatprep.subr.bf16.mxu0 0
  %503 = vmatpush2.bf16.msra.mxu0 0
  %504 = vmatprep.subr.bf16.mxu0 0
  %505 = vmatpush2.bf16.msra.mxu0 0
  %506 = vmatprep.subr.bf16.mxu0 0
  %507 = vmatpush2.bf16.msra.mxu0 0
  %508 = vmatprep.subr.bf16.mxu0 0
  %509 = vmatpush2.bf16.msra.mxu0 0
  %510 = vmatprep.mubr.bf16.mxu0 0
  %511 = vmatmul.mubr.bf16.gmra.mxu0 %v312
  %v512 = vpop.f32.mrf.mxu0
  %v513 = vadd.f32 %v68, %v512
  %v514 = vpop.f32.mrf.mxu0
  %v515 = vadd.f32 %v68, %v514
  %v516 = vpop.f32.mrf.mxu0
  %v517 = vpop.f32.mrf.mxu0
  %518 = vdwg.mxu0
  %519 = vmatprep.subr.bf16.mxu0 0
  %520 = vmatpush1.bf16.msra.mxu0 0
  %521 = vmatprep.subr.bf16.mxu0 0
  %522 = vmatpush1.bf16.msra.mxu0 0
  %523 = vmatprep.subr.bf16.mxu0 0
  %524 = vmatpush1.bf16.msra.mxu0 0
  %525 = vmatprep.subr.bf16.mxu0 0
  %526 = vmatpush1.bf16.msra.mxu0 0
  %527 = vmatprep.subr.bf16.mxu0 0
  %528 = vmatpush1.bf16.msra.mxu0 0
  %529 = vmatprep.subr.bf16.mxu0 %v257
  %530 = vmatpush1.bf16.msra.mxu0 %v256
  %531 = vmatprep.subr.bf16.mxu0 %v241
  %532 = vmatpush1.bf16.msra.mxu0 %v240
  %533 = vmatprep.subr.bf16.mxu0 %v225
  %534 = vmatpush1.bf16.msra.mxu0 %v224
  %535 = vmatprep.subr.bf16.mxu0 0
  %536 = vmatpush2.bf16.msra.mxu0 0
  %537 = vmatprep.subr.bf16.mxu0 0
  %538 = vmatpush2.bf16.msra.mxu0 0
  %539 = vmatprep.subr.bf16.mxu0 0
  %540 = vmatpush2.bf16.msra.mxu0 0
  %541 = vmatprep.subr.bf16.mxu0 0
  %542 = vmatpush2.bf16.msra.mxu0 0
  %543 = vmatprep.subr.bf16.mxu0 0
  %544 = vmatpush2.bf16.msra.mxu0 0
  %545 = vmatprep.subr.bf16.mxu0 0
  %546 = vmatpush2.bf16.msra.mxu0 0
  %547 = vmatprep.subr.bf16.mxu0 0
  %548 = vmatpush2.bf16.msra.mxu0 0
  %549 = vmatprep.subr.bf16.mxu0 0
  %550 = vmatpush2.bf16.msra.mxu0 0
  %551 = vmatprep.mubr.bf16.mxu0 0
  %552 = vmatmul.mubr.bf16.gmra.mxu0 %v312
  %v553 = vpop.f32.mrf.mxu0
  %v554 = vadd.f32 %v68, %v553
  %v555 = vpop.f32.mrf.mxu0
  %v556 = vadd.f32 %v68, %v555
  %v557 = vpop.f32.mrf.mxu0
  %v558 = vpop.f32.mrf.mxu0
  %559 = vdwg.mxu0
  %560 = vmatprep.subr.bf16.mxu0 0
  %561 = vmatpush1.bf16.msra.mxu0 0
  %562 = vmatprep.subr.bf16.mxu0 0
  %563 = vmatpush1.bf16.msra.mxu0 0
  %564 = vmatprep.subr.bf16.mxu0 0
  %565 = vmatpush1.bf16.msra.mxu0 0
  %566 = vmatprep.subr.bf16.mxu0 0
  %567 = vmatpush1.bf16.msra.mxu0 0
  %568 = vmatprep.subr.bf16.mxu0 0
  %569 = vmatpush1.bf16.msra.mxu0 0
  %570 = vmatprep.subr.bf16.mxu0 %v259
  %571 = vmatpush1.bf16.msra.mxu0 %v258
  %572 = vmatprep.subr.bf16.mxu0 %v243
  %573 = vmatpush1.bf16.msra.mxu0 %v242
  %574 = vmatprep.subr.bf16.mxu0 %v227
  %575 = vmatpush1.bf16.msra.mxu0 %v226
  %576 = vmatprep.subr.bf16.mxu0 0
  %577 = vmatpush2.bf16.msra.mxu0 0
  %578 = vmatprep.subr.bf16.mxu0 0
  %579 = vmatpush2.bf16.msra.mxu0 0
  %580 = vmatprep.subr.bf16.mxu0 0
  %581 = vmatpush2.bf16.msra.mxu0 0
  %582 = vmatprep.subr.bf16.mxu0 0
  %583 = vmatpush2.bf16.msra.mxu0 0
  %584 = vmatprep.subr.bf16.mxu0 0
  %585 = vmatpush2.bf16.msra.mxu0 0
  %586 = vmatprep.subr.bf16.mxu0 0
  %587 = vmatpush2.bf16.msra.mxu0 0
  %588 = vmatprep.subr.bf16.mxu0 0
  %589 = vmatpush2.bf16.msra.mxu0 0
  %590 = vmatprep.subr.bf16.mxu0 0
  %591 = vmatpush2.bf16.msra.mxu0 0
  %592 = vmatprep.mubr.bf16.mxu0 0
  %593 = vmatmul.mubr.bf16.gmra.mxu0 %v312
  %v594 = vpop.f32.mrf.mxu0
  %v595 = vadd.f32 %v68, %v594
  %v596 = vpop.f32.mrf.mxu0
  %v597 = vadd.f32 %v68, %v596
  %v598 = vpop.f32.mrf.mxu0
  %v599 = vpop.f32.mrf.mxu0
  %600 = vdwg.mxu0
  %601 = vmatprep.subr.bf16.mxu0 0
  %602 = vmatpush1.bf16.msra.mxu0 0
  %603 = vmatprep.subr.bf16.mxu0 0
  %604 = vmatpush1.bf16.msra.mxu0 0
  %605 = vmatprep.subr.bf16.mxu0 0
  %606 = vmatpush1.bf16.msra.mxu0 0
  %607 = vmatprep.subr.bf16.mxu0 0
  %608 = vmatpush1.bf16.msra.mxu0 0
  %609 = vmatprep.subr.bf16.mxu0 0
  %610 = vmatpush1.bf16.msra.mxu0 0
  %611 = vmatprep.subr.bf16.mxu0 %v261
  %612 = vmatpush1.bf16.msra.mxu0 %v260
  %613 = vmatprep.subr.bf16.mxu0 %v245
  %614 = vmatpush1.bf16.msra.mxu0 %v244
  %615 = vmatprep.subr.bf16.mxu0 %v229
  %616 = vmatpush1.bf16.msra.mxu0 %v228
  %617 = vmatprep.subr.bf16.mxu0 0
  %618 = vmatpush2.bf16.msra.mxu0 0
  %619 = vmatprep.subr.bf16.mxu0 0
  %620 = vmatpush2.bf16.msra.mxu0 0
  %621 = vmatprep.subr.bf16.mxu0 0
  %622 = vmatpush2.bf16.msra.mxu0 0
  %623 = vmatprep.subr.bf16.mxu0 0
  %624 = vmatpush2.bf16.msra.mxu0 0
  %625 = vmatprep.subr.bf16.mxu0 0
  %626 = vmatpush2.bf16.msra.mxu0 0
  %627 = vmatprep.subr.bf16.mxu0 0
  %628 = vmatpush2.bf16.msra.mxu0 0
  %629 = vmatprep.subr.bf16.mxu0 0
  %630 = vmatpush2.bf16.msra.mxu0 0
  %631 = vmatprep.subr.bf16.mxu0 0
  %632 = vmatpush2.bf16.msra.mxu0 0
  %633 = vmatprep.mubr.bf16.mxu0 0
  %634 = vmatmul.mubr.bf16.gmra.mxu0 %v312
  %v635 = vpop.f32.mrf.mxu0
  %v636 = vadd.f32 %v68, %v635
  %v637 = vpop.f32.mrf.mxu0
  %v638 = vadd.f32 %v68, %v637
  %v639 = vpop.f32.mrf.mxu0
  %v640 = vpop.f32.mrf.mxu0
  %641 = vdwg.mxu0
  %v642 = vmul.f32 %v349, 0.2
  %v643 = vmul.f32 %v351, 0.2
  %v644 = vmul.f32 %v390, 0.2
  %v645 = vmul.f32 %v392, 0.2
  %v646 = vmul.f32 %v431, 0.2
  %v647 = vmul.f32 %v433, 0.2
  %v648 = vmul.f32 %v472, 0.2
  %v649 = vmul.f32 %v474, 0.2
  %v650 = vmul.f32 %v513, 0.2
  %v651 = vmul.f32 %v515, 0.2
  %v652 = vmul.f32 %v554, 0.2
  %v653 = vmul.f32 %v556, 0.2
  %v654 = vmul.f32 %v595, 0.2
  %v655 = vmul.f32 %v597, 0.2
  %v656 = vmul.f32 %v636, 0.2
  %v657 = vmul.f32 %v638, 0.2
  %v658 = vmax.f32 %v349, %v642
  %v659 = vmax.f32 %v351, %v643
  %v660 = vmax.f32 %v390, %v644
  %v661 = vmax.f32 %v392, %v645
  %v662 = vmax.f32 %v431, %v646
  %v663 = vmax.f32 %v433, %v647
  %v664 = vmax.f32 %v472, %v648
  %v665 = vmax.f32 %v474, %v649
  %v666 = vmax.f32 %v513, %v650
  %v667 = vmax.f32 %v515, %v651
  %v668 = vmax.f32 %v554, %v652
  %v669 = vmax.f32 %v556, %v653
  %v670 = vmax.f32 %v595, %v654
  %v671 = vmax.f32 %v597, %v655
  %v672 = vmax.f32 %v636, %v656
  %v673 = vmax.f32 %v638, %v657
  %v674 = vpack.c.bf16 %v658, %v658
  %v675 = vpack.c.bf16 %v659, %v659
  %v676 = vpack.c.bf16 %v660, %v660
  %v677 = vpack.c.bf16 %v661, %v661
  %v678 = vpack.c.bf16 %v662, %v662
  %v679 = vpack.c.bf16 %v663, %v663
  %v680 = vpack.c.bf16 %v664, %v664
  %v681 = vpack.c.bf16 %v665, %v665
  %v682 = vpack.c.bf16 %v666, %v666
  %v683 = vpack.c.bf16 %v667, %v667
  %v684 = vpack.c.bf16 %v668, %v668
  %v685 = vpack.c.bf16 %v669, %v669
  %v686 = vpack.c.bf16 %v670, %v670
  %v687 = vpack.c.bf16 %v671, %v671
  %v688 = vpack.c.bf16 %v672, %v672
  %v689 = vpack.c.bf16 %v673, %v673
  %v706 = vunpack.c.l.b16 %v674
  %v707 = vunpack.c.l.b16 %v675
  %v708 = vunpack.c.l.b16 %v676
  %v709 = vunpack.c.l.b16 %v677
  %v710 = vunpack.c.l.b16 %v678
  %v711 = vunpack.c.l.b16 %v679
  %v712 = vunpack.c.l.b16 %v680
  %v713 = vunpack.c.l.b16 %v681
  %v714 = vunpack.c.l.b16 %v682
  %v715 = vunpack.c.l.b16 %v683
  %v716 = vunpack.c.l.b16 %v684
  %v717 = vunpack.c.l.b16 %v685
  %v718 = vunpack.c.l.b16 %v686
  %v719 = vunpack.c.l.b16 %v687
  %v720 = vunpack.c.l.b16 %v688
  %v721 = vunpack.c.l.b16 %v689
  %v722 = vpack.c.b16 %v707, %v706
  %v723 = vpack.c.b16 %v709, %v708
  %v724 = vpack.c.b16 %v711, %v710
  %v725 = vpack.c.b16 %v713, %v712
  %v726 = vpack.c.b16 %v715, %v714
  %v727 = vpack.c.b16 %v717, %v716
  %v728 = vpack.c.b16 %v719, %v718
  %v729 = vpack.c.b16 %v721, %v720
  %738 = vst [vmem:[%s3] sm:$0xff] %v722
  %739 = vst [vmem:[%s3 + $0x8] sm:$0xff] %v723
  %740 = vst [vmem:[%s3 + $0x10] sm:$0xff] %v724
  %741 = vst [vmem:[%s3 + $0x18] sm:$0xff] %v725
  %742 = vst [vmem:[%s3 + $0x20] sm:$0xff] %v726
  %743 = vst [vmem:[%s3 + $0x28] sm:$0xff] %v727
  %744 = vst [vmem:[%s3 + $0x30] sm:$0xff] %v728
  %745 = vst [vmem:[%s3 + $0x38] sm:$0xff] %v729
  // Predicated region
  $region14: #{_lambda_.7} parent=0 // pred_check
    _
  $region15: #{_lambda_.7} parent=0 // pred_check_branch
    %747 = sbr.rel (0) target = $region17
  $region16: #{_lambda_.7} parent=0 // pred_region
    _
  $region17: #{_lambda_.7} parent=0 // pred_fallthru
    _
  // Predicated region
  $region18: #{_lambda_.7} parent=0 // pred_check
    _
  $region19: #{_lambda_.7} parent=0 // pred_check_branch
    %749 = sbr.rel (0) target = $region21
  $region20: #{_lambda_.7} parent=0 // pred_region
    _
  $region21: #{_lambda_.7} parent=0 // pred_fallthru
    _

// kernel: _lambda_.8
$region0: #{_lambda_.8}
  #allocation0 [shape = 'u32[]', space=smem, size = 0x4, offset = 0x4, fixed_abs, tag = 'smem constant byte address 0x4 - core index']
  #allocation1 [shape = 'u32[144,128]{1,0:T(1,128)}', space=vmem, size = 0x12000, scoped, tag = 'internal scratch']
  %s0 = inlined_call_operand.vmem [shape: bf16[128,512], index: 0, kind: input, shape index: {}]
  %s1 = inlined_call_operand.vmem [shape: bf16[16,128], index: 1, kind: input, shape index: {}]
  %s2 = inlined_call_operand.vmem [shape: bf16[16,512], index: 2, kind: output, shape index: {0}]
  %s3 = inlined_call_operand.vmem [shape: f32[1,16,1], index: 3, kind: output, shape index: {1}]
  %s4 = inlined_call_operand.vmem [shape: f32[1,16,1], index: 4, kind: output, shape index: {2}]
  %5 = xla_tuple %s2, %s3, %s4
  %s6 = sld [smem:[#allocation0]]
  $region34: #{_lambda_.8} parent=0
    _
  %s8 = ssub.s32 1, %s6
  %s9 = scalar_select 0, %s8, %s6
  // Predicated region
  $region2: #{_lambda_.8} parent=0 // pred_check
    _
  $region3: #{_lambda_.8} parent=0 // pred_check_branch
    %11 = sbr.rel (0) target = $region5
  $region4: #{_lambda_.8} parent=0 // pred_region
    _
  $region5: #{_lambda_.8} parent=0 // pred_fallthru
    _
  // Predicated region
  $region6: #{_lambda_.8} parent=0 // pred_check
    _
  $region7: #{_lambda_.8} parent=0 // pred_check_branch
    %13 = sbr.rel (0) target = $region9
  $region8: #{_lambda_.8} parent=0 // pred_region
    _
  $region9: #{_lambda_.8} parent=0 // pred_fallthru
    _
  %v15 = vld [vmem:[%s1] sm:$0xf]
  %v16 = vld [vmem:[%s1 + $0x4] sm:$0xf]
  %v17 = vld [vmem:[%s0] sm:$0xff]
  %v18 = vld [vmem:[%s0 + $0x8] sm:$0xff]
  %v19 = vld [vmem:[%s0 + $0x10] sm:$0xff]
  %v20 = vld [vmem:[%s0 + $0x18] sm:$0xff]
  %v21 = vld [vmem:[%s0 + $0x20] sm:$0xff]
  %v22 = vld [vmem:[%s0 + $0x28] sm:$0xff]
  %v23 = vld [vmem:[%s0 + $0x30] sm:$0xff]
  %v24 = vld [vmem:[%s0 + $0x38] sm:$0xff]
  %v25 = vld [vmem:[%s0 + $0x40] sm:$0xff]
  %v26 = vld [vmem:[%s0 + $0x48] sm:$0xff]
  %v27 = vld [vmem:[%s0 + $0x50] sm:$0xff]
  %v28 = vld [vmem:[%s0 + $0x58] sm:$0xff]
  %v29 = vld [vmem:[%s0 + $0x60] sm:$0xff]
  %v30 = vld [vmem:[%s0 + $0x68] sm:$0xff]
  %v31 = vld [vmem:[%s0 + $0x70] sm:$0xff]
  %v32 = vld [vmem:[%s0 + $0x78] sm:$0xff]
  %v33 = vld [vmem:[%s0 + $0x80] sm:$0xff]
  %v34 = vld [vmem:[%s0 + $0x88] sm:$0xff]
  %v35 = vld [vmem:[%s0 + $0x90] sm:$0xff]
  %v36 = vld [vmem:[%s0 + $0x98] sm:$0xff]
  %v37 = vld [vmem:[%s0 + $0xa0] sm:$0xff]
  %v38 = vld [vmem:[%s0 + $0xa8] sm:$0xff]
  %v39 = vld [vmem:[%s0 + $0xb0] sm:$0xff]
  %v40 = vld [vmem:[%s0 + $0xb8] sm:$0xff]
  %v41 = vld [vmem:[%s0 + $0xc0] sm:$0xff]
  %v42 = vld [vmem:[%s0 + $0xc8] sm:$0xff]
  %v43 = vld [vmem:[%s0 + $0xd0] sm:$0xff]
  %v44 = vld [vmem:[%s0 + $0xd8] sm:$0xff]
  %v45 = vld [vmem:[%s0 + $0xe0] sm:$0xff]
  %v46 = vld [vmem:[%s0 + $0xe8] sm:$0xff]
  %v47 = vld [vmem:[%s0 + $0xf0] sm:$0xff]
  %v48 = vld [vmem:[%s0 + $0xf8] sm:$0xff]
  %v51 = vunpack.c.l.b16 %v15
  %v52 = vunpack.c.l.b16 %v16
  %v53 = vpack.c.b16 %v52, %v51
  %v87 = vunpack.c.l.b16 %v17
  %v88 = vunpack.c.h.b16 %v17
  %v89 = vunpack.c.l.b16 %v18
  %v90 = vunpack.c.h.b16 %v18
  %v91 = vunpack.c.l.b16 %v19
  %v92 = vunpack.c.h.b16 %v19
  %v93 = vunpack.c.l.b16 %v20
  %v94 = vunpack.c.h.b16 %v20
  %v95 = vunpack.c.l.b16 %v21
  %v96 = vunpack.c.h.b16 %v21
  %v97 = vunpack.c.l.b16 %v22
  %v98 = vunpack.c.h.b16 %v22
  %v99 = vunpack.c.l.b16 %v23
  %v100 = vunpack.c.h.b16 %v23
  %v101 = vunpack.c.l.b16 %v24
  %v102 = vunpack.c.h.b16 %v24
  %v103 = vunpack.c.l.b16 %v25
  %v104 = vunpack.c.h.b16 %v25
  %v105 = vunpack.c.l.b16 %v26
  %v106 = vunpack.c.h.b16 %v26
  %v107 = vunpack.c.l.b16 %v27
  %v108 = vunpack.c.h.b16 %v27
  %v109 = vunpack.c.l.b16 %v28
  %v110 = vunpack.c.h.b16 %v28
  %v111 = vunpack.c.l.b16 %v29
  %v112 = vunpack.c.h.b16 %v29
  %v113 = vunpack.c.l.b16 %v30
  %v114 = vunpack.c.h.b16 %v30
  %v115 = vunpack.c.l.b16 %v31
  %v116 = vunpack.c.h.b16 %v31
  %v117 = vunpack.c.l.b16 %v32
  %v118 = vunpack.c.h.b16 %v32
  %v119 = vunpack.c.l.b16 %v33
  %v120 = vunpack.c.h.b16 %v33
  %v121 = vunpack.c.l.b16 %v34
  %v122 = vunpack.c.h.b16 %v34
  %v123 = vunpack.c.l.b16 %v35
  %v124 = vunpack.c.h.b16 %v35
  %v125 = vunpack.c.l.b16 %v36
  %v126 = vunpack.c.h.b16 %v36
  %v127 = vunpack.c.l.b16 %v37
  %v128 = vunpack.c.h.b16 %v37
  %v129 = vunpack.c.l.b16 %v38
  %v130 = vunpack.c.h.b16 %v38
  %v131 = vunpack.c.l.b16 %v39
  %v132 = vunpack.c.h.b16 %v39
  %v133 = vunpack.c.l.b16 %v40
  %v134 = vunpack.c.h.b16 %v40
  %v135 = vunpack.c.l.b16 %v41
  %v136 = vunpack.c.h.b16 %v41
  %v137 = vunpack.c.l.b16 %v42
  %v138 = vunpack.c.h.b16 %v42
  %v139 = vunpack.c.l.b16 %v43
  %v140 = vunpack.c.h.b16 %v43
  %v141 = vunpack.c.l.b16 %v44
  %v142 = vunpack.c.h.b16 %v44
  %v143 = vunpack.c.l.b16 %v45
  %v144 = vunpack.c.h.b16 %v45
  %v145 = vunpack.c.l.b16 %v46
  %v146 = vunpack.c.h.b16 %v46
  %v147 = vunpack.c.l.b16 %v47
  %v148 = vunpack.c.h.b16 %v47
  %v149 = vunpack.c.l.b16 %v48
  %v150 = vunpack.c.h.b16 %v48
  %v151 = vpack.c.b16 %v91, %v87
  %v152 = vpack.c.b16 %v92, %v88
  %v153 = vpack.c.b16 %v93, %v89
  %v154 = vpack.c.b16 %v94, %v90
  %v155 = vpack.c.b16 %v99, %v95
  %v156 = vpack.c.b16 %v100, %v96
  %v157 = vpack.c.b16 %v101, %v97
  %v158 = vpack.c.b16 %v102, %v98
  %v159 = vpack.c.b16 %v107, %v103
  %v160 = vpack.c.b16 %v108, %v104
  %v161 = vpack.c.b16 %v109, %v105
  %v162 = vpack.c.b16 %v110, %v106
  %v163 = vpack.c.b16 %v115, %v111
  %v164 = vpack.c.b16 %v116, %v112
  %v165 = vpack.c.b16 %v117, %v113
  %v166 = vpack.c.b16 %v118, %v114
  %v167 = vpack.c.b16 %v123, %v119
  %v168 = vpack.c.b16 %v124, %v120
  %v169 = vpack.c.b16 %v125, %v121
  %v170 = vpack.c.b16 %v126, %v122
  %v171 = vpack.c.b16 %v131, %v127
  %v172 = vpack.c.b16 %v132, %v128
  %v173 = vpack.c.b16 %v133, %v129
  %v174 = vpack.c.b16 %v134, %v130
  %v175 = vpack.c.b16 %v139, %v135
  %v176 = vpack.c.b16 %v140, %v136
  %v177 = vpack.c.b16 %v141, %v137
  %v178 = vpack.c.b16 %v142, %v138
  %v179 = vpack.c.b16 %v147, %v143
  %v180 = vpack.c.b16 %v148, %v144
  %v181 = vpack.c.b16 %v149, %v145
  %v182 = vpack.c.b16 %v150, %v146
  %215 = vmatprep.subr.bf16.mxu0 %v180
  %216 = vmatpush1.bf16.msra.mxu0 %v179
  %217 = vmatprep.subr.bf16.mxu0 %v176
  %218 = vmatpush1.bf16.msra.mxu0 %v175
  %219 = vmatprep.subr.bf16.mxu0 %v172
  %220 = vmatpush1.bf16.msra.mxu0 %v171
  %221 = vmatprep.subr.bf16.mxu0 %v168
  %222 = vmatpush1.bf16.msra.mxu0 %v167
  %223 = vmatprep.subr.bf16.mxu0 %v164
  %224 = vmatpush1.bf16.msra.mxu0 %v163
  %225 = vmatprep.subr.bf16.mxu0 %v160
  %226 = vmatpush1.bf16.msra.mxu0 %v159
  %227 = vmatprep.subr.bf16.mxu0 %v156
  %228 = vmatpush1.bf16.msra.mxu0 %v155
  %229 = vmatprep.subr.bf16.mxu0 %v152
  %230 = vmatpush1.bf16.msra.mxu0 %v151
  %231 = vmatprep.subr.bf16.mxu0 0
  %232 = vmatpush2.bf16.msra.mxu0 0
  %233 = vmatprep.subr.bf16.mxu0 0
  %234 = vmatpush2.bf16.msra.mxu0 0
  %235 = vmatprep.subr.bf16.mxu0 0
  %236 = vmatpush2.bf16.msra.mxu0 0
  %237 = vmatprep.subr.bf16.mxu0 0
  %238 = vmatpush2.bf16.msra.mxu0 0
  %239 = vmatprep.subr.bf16.mxu0 0
  %240 = vmatpush2.bf16.msra.mxu0 0
  %241 = vmatprep.subr.bf16.mxu0 0
  %242 = vmatpush2.bf16.msra.mxu0 0
  %243 = vmatprep.subr.bf16.mxu0 0
  %244 = vmatpush2.bf16.msra.mxu0 0
  %245 = vmatprep.subr.bf16.mxu0 0
  %246 = vmatpush2.bf16.msra.mxu0 0
  %247 = vmatprep.mubr.bf16.mxu0 0
  %248 = vmatmul.mubr.bf16.gmra.mxu0 %v53
  %v249 = vpop.f32.mrf.mxu0
  %v250 = vadd.f32 0.0, %v249
  %v251 = vpop.f32.mrf.mxu0
  %v252 = vadd.f32 0.0, %v251
  %v253 = vpop.f32.mrf.mxu0
  %v254 = vadd.f32 0.0, %v253
  %v255 = vpop.f32.mrf.mxu0
  %v256 = vadd.f32 0.0, %v255
  %257 = vdwg.mxu0
  %258 = vmatprep.subr.bf16.mxu0 %v182
  %259 = vmatpush1.bf16.msra.mxu0 %v181
  %260 = vmatprep.subr.bf16.mxu0 %v178
  %261 = vmatpush1.bf16.msra.mxu0 %v177
  %262 = vmatprep.subr.bf16.mxu0 %v174
  %263 = vmatpush1.bf16.msra.mxu0 %v173
  %264 = vmatprep.subr.bf16.mxu0 %v170
  %265 = vmatpush1.bf16.msra.mxu0 %v169
  %266 = vmatprep.subr.bf16.mxu0 %v166
  %267 = vmatpush1.bf16.msra.mxu0 %v165
  %268 = vmatprep.subr.bf16.mxu0 %v162
  %269 = vmatpush1.bf16.msra.mxu0 %v161
  %270 = vmatprep.subr.bf16.mxu0 %v158
  %271 = vmatpush1.bf16.msra.mxu0 %v157
  %272 = vmatprep.subr.bf16.mxu0 %v154
  %273 = vmatpush1.bf16.msra.mxu0 %v153
  %274 = vmatprep.subr.bf16.mxu0 0
  %275 = vmatpush2.bf16.msra.mxu0 0
  %276 = vmatprep.subr.bf16.mxu0 0
  %277 = vmatpush2.bf16.msra.mxu0 0
  %278 = vmatprep.subr.bf16.mxu0 0
  %279 = vmatpush2.bf16.msra.mxu0 0
  %280 = vmatprep.subr.bf16.mxu0 0
  %281 = vmatpush2.bf16.msra.mxu0 0
  %282 = vmatprep.subr.bf16.mxu0 0
  %283 = vmatpush2.bf16.msra.mxu0 0
  %284 = vmatprep.subr.bf16.mxu0 0
  %285 = vmatpush2.bf16.msra.mxu0 0
  %286 = vmatprep.subr.bf16.mxu0 0
  %287 = vmatpush2.bf16.msra.mxu0 0
  %288 = vmatprep.subr.bf16.mxu0 0
  %289 = vmatpush2.bf16.msra.mxu0 0
  %290 = vmatprep.mubr.bf16.mxu0 0
  %291 = vmatmul.mubr.bf16.gmra.mxu0 %v53
  %v292 = vpop.f32.mrf.mxu0
  %v293 = vadd.f32 0.0, %v292
  %v294 = vpop.f32.mrf.mxu0
  %v295 = vadd.f32 0.0, %v294
  %v296 = vpop.f32.mrf.mxu0
  %v297 = vadd.f32 0.0, %v296
  %v298 = vpop.f32.mrf.mxu0
  %v299 = vadd.f32 0.0, %v298
  %300 = vdwg.mxu0
  %v301 = vpack.c.bf16 %v254, %v250
  %v302 = vpack.c.bf16 %v256, %v252
  %v303 = vpack.c.bf16 %v297, %v293
  %v304 = vpack.c.bf16 %v299, %v295
  %v309 = vunpack.c.l.b16 %v301
  %v310 = vunpack.c.l.b16 %v302
  %v311 = vunpack.c.l.b16 %v303
  %v312 = vunpack.c.l.b16 %v304
  %v313 = vunpack.c.h.b16 %v301
  %v314 = vunpack.c.h.b16 %v302
  %v315 = vunpack.c.h.b16 %v303
  %v316 = vunpack.c.h.b16 %v304
  %v317 = vpack.c.b16 %v310, %v309
  %v318 = vpack.c.b16 %v312, %v311
  %v319 = vpack.c.b16 %v314, %v313
  %v320 = vpack.c.b16 %v316, %v315
  %325 = vst [vmem:[%s2] sm:$0xff] %v317
  %326 = vst [vmem:[%s2 + $0x8] sm:$0xff] %v318
  %327 = vst [vmem:[%s2 + $0x10] sm:$0xff] %v319
  %328 = vst [vmem:[%s2 + $0x18] sm:$0xff] %v320
  %v329 = vadd.f32 %v250, %v252
  %v330 = vadd.f32 %v329, %v293
  %v331 = vadd.f32 %v330, %v295
  %332 = vadd.xlane.f32.xlu0 %v331
  %v333 = vpop.xlane.xlu0 %332
  %v334 = vadd.f32 %v254, %v256
  %v335 = vadd.f32 %v334, %v297
  %v336 = vadd.f32 %v335, %v299
  %337 = vadd.xlane.f32.xlu0 %v336
  %v338 = vpop.xlane.xlu0 %337
  %vm339 = vcmask 7168
  %340 = vst.msk [vmem:[%s3] sm:$0xff] %vm339, %v333
  %341 = vst.msk [vmem:[%s3 + $0x8] sm:$0xff] %vm339, %v338
  %v342 = vmul.f32 %v250, %v250
  %v343 = vmul.f32 %v252, %v252
  %v344 = vmul.f32 %v293, %v293
  %v345 = vmul.f32 %v295, %v295
  %v346 = vmul.f32 %v254, %v254
  %v347 = vmul.f32 %v256, %v256
  %v348 = vmul.f32 %v297, %v297
  %v349 = vmul.f32 %v299, %v299
  %v350 = vadd.f32 %v342, %v343
  %v351 = vadd.f32 %v350, %v344
  %v352 = vadd.f32 %v351, %v345
  %353 = vadd.xlane.f32.xlu0 %v352
  %v354 = vpop.xlane.xlu0 %353
  %v355 = vadd.f32 %v346, %v347
  %v356 = vadd.f32 %v355, %v348
  %v357 = vadd.f32 %v356, %v349
  %358 = vadd.xlane.f32.xlu0 %v357
  %v359 = vpop.xlane.xlu0 %358
  %360 = vst.msk [vmem:[%s4] sm:$0xff] %vm339, %v354
  %361 = vst.msk [vmem:[%s4 + $0x8] sm:$0xff] %vm339, %v359
  // Predicated region
  $region10: #{_lambda_.8} parent=0 // pred_check
    _
  $region11: #{_lambda_.8} parent=0 // pred_check_branch
    %363 = sbr.rel (0) target = $region13
  $region12: #{_lambda_.8} parent=0 // pred_region
    _
  $region13: #{_lambda_.8} parent=0 // pred_fallthru
    _
  // Predicated region
  $region14: #{_lambda_.8} parent=0 // pred_check
    _
  $region15: #{_lambda_.8} parent=0 // pred_check_branch
    %365 = sbr.rel (0) target = $region17
  $region16: #{_lambda_.8} parent=0 // pred_region
    _
  $region17: #{_lambda_.8} parent=0 // pred_fallthru
    _
  // Predicated region
  $region18: #{_lambda_.8} parent=0 // pred_check
    _
  $region19: #{_lambda_.8} parent=0 // pred_check_branch
    %367 = sbr.rel (0) target = $region21
  $region20: #{_lambda_.8} parent=0 // pred_region
    _
  $region21: #{_lambda_.8} parent=0 // pred_fallthru
    _
  // Predicated region
  $region22: #{_lambda_.8} parent=0 // pred_check
    _
  $region23: #{_lambda_.8} parent=0 // pred_check_branch
    %369 = sbr.rel (0) target = $region25
  $region24: #{_lambda_.8} parent=0 // pred_region
    _
  $region25: #{_lambda_.8} parent=0 // pred_fallthru
    _
  // Predicated region
  $region26: #{_lambda_.8} parent=0 // pred_check
    _
  $region27: #{_lambda_.8} parent=0 // pred_check_branch
    %371 = sbr.rel (0) target = $region29
  $region28: #{_lambda_.8} parent=0 // pred_region
    _
  $region29: #{_lambda_.8} parent=0 // pred_fallthru
    _
  // Predicated region
  $region30: #{_lambda_.8} parent=0 // pred_check
    _
  $region31: #{_lambda_.8} parent=0 // pred_check_branch
    %373 = sbr.rel (0) target = $region33
  $region32: #{_lambda_.8} parent=0 // pred_region
    _
  $region33: #{_lambda_.8} parent=0 // pred_fallthru
    _

// kernel: _lambda_.9
$region0: #{_lambda_.9}
  #allocation0 [shape = 'u32[]', space=smem, size = 0x4, offset = 0x4, fixed_abs, tag = 'smem constant byte address 0x4 - core index']
  #allocation1 [shape = 'u32[144,128]{1,0:T(1,128)}', space=vmem, size = 0x12000, scoped, tag = 'internal scratch']
  %s0 = inlined_call_operand.vmem [shape: bf16[16,512], index: 0, kind: input, shape index: {}]
  %s1 = inlined_call_operand.vmem [shape: f32[16,1], index: 1, kind: input, shape index: {}]
  %s2 = inlined_call_operand.vmem [shape: f32[16,1], index: 2, kind: input, shape index: {}]
  %s3 = inlined_call_operand.vmem [shape: bf16[16,512], index: 3, kind: output, shape index: {}]
  %s4 = sld [smem:[#allocation0]]
  $region22: #{_lambda_.9} parent=0
    _
  %s6 = ssub.s32 1, %s4
  %s7 = scalar_select 0, %s6, %s4
  // Predicated region
  $region2: #{_lambda_.9} parent=0 // pred_check
    _
  $region3: #{_lambda_.9} parent=0 // pred_check_branch
    %9 = sbr.rel (0) target = $region5
  $region4: #{_lambda_.9} parent=0 // pred_region
    _
  $region5: #{_lambda_.9} parent=0 // pred_fallthru
    _
  // Predicated region
  $region6: #{_lambda_.9} parent=0 // pred_check
    _
  $region7: #{_lambda_.9} parent=0 // pred_check_branch
    %11 = sbr.rel (0) target = $region9
  $region8: #{_lambda_.9} parent=0 // pred_region
    _
  $region9: #{_lambda_.9} parent=0 // pred_fallthru
    _
  // Predicated region
  $region10: #{_lambda_.9} parent=0 // pred_check
    _
  $region11: #{_lambda_.9} parent=0 // pred_check_branch
    %13 = sbr.rel (0) target = $region13
  $region12: #{_lambda_.9} parent=0 // pred_region
    _
  $region13: #{_lambda_.9} parent=0 // pred_fallthru
    _
  %v14 = vld [vmem:[%s0] sm:$0xff]
  %v15 = vld [vmem:[%s0 + $0x8] sm:$0xff]
  %v16 = vld [vmem:[%s0 + $0x10] sm:$0xff]
  %v17 = vld [vmem:[%s0 + $0x18] sm:$0xff]
  %v18 = vunpack.c.l.bf16 %v14
  %v19 = vunpack.c.h.bf16 %v14
  %v20 = vunpack.c.l.bf16 %v15
  %v21 = vunpack.c.h.bf16 %v15
  %v22 = vunpack.c.l.bf16 %v16
  %v23 = vunpack.c.h.bf16 %v16
  %v24 = vunpack.c.l.bf16 %v17
  %v25 = vunpack.c.h.bf16 %v17
  %v26 = vld [vmem:[%s1] sm:$0xff]
  %v27 = vld [vmem:[%s1 + $0x8] sm:$0xff]
  %29 = vset.pattern.permute.xlu0 0
  %30 = vperm.xlu0 %29, %v26
  %v31 = vpop.permute.xlu0 %30
  %34 = vset.pattern.permute.xlu0 0
  %35 = vperm.xlu0 %34, %v27
  %v36 = vpop.permute.xlu0 %35
  %v38 = vmul.f32 %v18, %v31
  %v39 = vmul.f32 %v19, %v31
  %v40 = vmul.f32 %v20, %v31
  %v41 = vmul.f32 %v21, %v31
  %v42 = vmul.f32 %v22, %v36
  %v43 = vmul.f32 %v23, %v36
  %v44 = vmul.f32 %v24, %v36
  %v45 = vmul.f32 %v25, %v36
  %v46 = vld [vmem:[%s2] sm:$0xff]
  %v47 = vld [vmem:[%s2 + $0x8] sm:$0xff]
  %49 = vset.pattern.permute.xlu0 0
  %50 = vperm.xlu0 %49, %v46
  %v51 = vpop.permute.xlu0 %50
  %54 = vset.pattern.permute.xlu0 0
  %55 = vperm.xlu0 %54, %v47
  %v56 = vpop.permute.xlu0 %55
  %v58 = vadd.f32 %v38, %v51
  %v59 = vadd.f32 %v39, %v51
  %v60 = vadd.f32 %v40, %v51
  %v61 = vadd.f32 %v41, %v51
  %v62 = vadd.f32 %v42, %v56
  %v63 = vadd.f32 %v43, %v56
  %v64 = vadd.f32 %v44, %v56
  %v65 = vadd.f32 %v45, %v56
  %v66 = vmul.f32 %v58, 0.2
  %v67 = vmul.f32 %v59, 0.2
  %v68 = vmul.f32 %v60, 0.2
  %v69 = vmul.f32 %v61, 0.2
  %v70 = vmul.f32 %v62, 0.2
  %v71 = vmul.f32 %v63, 0.2
  %v72 = vmul.f32 %v64, 0.2
  %v73 = vmul.f32 %v65, 0.2
  %v74 = vmax.f32 %v58, %v66
  %v75 = vmax.f32 %v59, %v67
  %v76 = vmax.f32 %v60, %v68
  %v77 = vmax.f32 %v61, %v69
  %v78 = vmax.f32 %v62, %v70
  %v79 = vmax.f32 %v63, %v71
  %v80 = vmax.f32 %v64, %v72
  %v81 = vmax.f32 %v65, %v73
  %v82 = vpack.c.bf16 %v78, %v74
  %v83 = vpack.c.bf16 %v79, %v75
  %v84 = vpack.c.bf16 %v80, %v76
  %v85 = vpack.c.bf16 %v81, %v77
  %v90 = vunpack.c.l.b16 %v82
  %v91 = vunpack.c.l.b16 %v83
  %v92 = vunpack.c.l.b16 %v84
  %v93 = vunpack.c.l.b16 %v85
  %v94 = vunpack.c.h.b16 %v82
  %v95 = vunpack.c.h.b16 %v83
  %v96 = vunpack.c.h.b16 %v84
  %v97 = vunpack.c.h.b16 %v85
  %v98 = vpack.c.b16 %v91, %v90
  %v99 = vpack.c.b16 %v93, %v92
  %v100 = vpack.c.b16 %v95, %v94
  %v101 = vpack.c.b16 %v97, %v96
  %106 = vst [vmem:[%s3] sm:$0xff] %v98
  %107 = vst [vmem:[%s3 + $0x8] sm:$0xff] %v99
  %108 = vst [vmem:[%s3 + $0x10] sm:$0xff] %v100
  %109 = vst [vmem:[%s3 + $0x18] sm:$0xff] %v101
  // Predicated region
  $region14: #{_lambda_.9} parent=0 // pred_check
    _
  $region15: #{_lambda_.9} parent=0 // pred_check_branch
    %111 = sbr.rel (0) target = $region17
  $region16: #{_lambda_.9} parent=0 // pred_region
    _
  $region17: #{_lambda_.9} parent=0 // pred_fallthru
    _
  // Predicated region
  $region18: #{_lambda_.9} parent=0 // pred_check
    _
  $region19: #{_lambda_.9} parent=0 // pred_check_branch
    %113 = sbr.rel (0) target = $region21
  $region20: #{_lambda_.9} parent=0 // pred_region
    _
  $region21: #{_lambda_.9} parent=0 // pred_fallthru
    _

// kernel: _lambda_.10
$region0: #{_lambda_.10}
  #allocation0 [shape = 'u32[]', space=smem, size = 0x4, offset = 0x4, fixed_abs, tag = 'smem constant byte address 0x4 - core index']
  #allocation1 [shape = 'u32[144,128]{1,0:T(1,128)}', space=vmem, size = 0x12000, scoped, tag = 'internal scratch']
  %s0 = inlined_call_operand.vmem [shape: bf16[256,128], index: 0, kind: input, shape index: {}]
  %s1 = inlined_call_operand.vmem [shape: bf16[32,256], index: 1, kind: input, shape index: {}]
  %s2 = inlined_call_operand.vmem [shape: bf16[32,128], index: 2, kind: output, shape index: {0}]
  %s3 = inlined_call_operand.vmem [shape: f32[1,32,1], index: 3, kind: output, shape index: {1}]
  %s4 = inlined_call_operand.vmem [shape: f32[1,32,1], index: 4, kind: output, shape index: {2}]
  %5 = xla_tuple %s2, %s3, %s4
  %s6 = sld [smem:[#allocation0]]
  $region34: #{_lambda_.10} parent=0
    _
  %s8 = ssub.s32 1, %s6
  %s9 = scalar_select 0, %s8, %s6
  // Predicated region
  $region2: #{_lambda_.10} parent=0 // pred_check
    _
  $region3: #{_lambda_.10} parent=0 // pred_check_branch
    %11 = sbr.rel (0) target = $region5
  $region4: #{_lambda_.10} parent=0 // pred_region
    _
  $region5: #{_lambda_.10} parent=0 // pred_fallthru
    _
  // Predicated region
  $region6: #{_lambda_.10} parent=0 // pred_check
    _
  $region7: #{_lambda_.10} parent=0 // pred_check_branch
    %13 = sbr.rel (0) target = $region9
  $region8: #{_lambda_.10} parent=0 // pred_region
    _
  $region9: #{_lambda_.10} parent=0 // pred_fallthru
    _
  %v15 = vld [vmem:[%s1] sm:$0xff]
  %v16 = vld [vmem:[%s1 + $0x8] sm:$0xff]
  %v17 = vld [vmem:[%s1 + $0x10] sm:$0xff]
  %v18 = vld [vmem:[%s1 + $0x18] sm:$0xff]
  %v19 = vld [vmem:[%s0] sm:$0xf]
  %v20 = vld [vmem:[%s0 + $0x4] sm:$0xf]
  %v21 = vld [vmem:[%s0 + $0x8] sm:$0xf]
  %v22 = vld [vmem:[%s0 + $0xc] sm:$0xf]
  %v23 = vld [vmem:[%s0 + $0x10] sm:$0xf]
  %v24 = vld [vmem:[%s0 + $0x14] sm:$0xf]
  %v25 = vld [vmem:[%s0 + $0x18] sm:$0xf]
  %v26 = vld [vmem:[%s0 + $0x1c] sm:$0xf]
  %v27 = vld [vmem:[%s0 + $0x20] sm:$0xf]
  %v28 = vld [vmem:[%s0 + $0x24] sm:$0xf]
  %v29 = vld [vmem:[%s0 + $0x28] sm:$0xf]
  %v30 = vld [vmem:[%s0 + $0x2c] sm:$0xf]
  %v31 = vld [vmem:[%s0 + $0x30] sm:$0xf]
  %v32 = vld [vmem:[%s0 + $0x34] sm:$0xf]
  %v33 = vld [vmem:[%s0 + $0x38] sm:$0xf]
  %v34 = vld [vmem:[%s0 + $0x3c] sm:$0xf]
  %v35 = vld [vmem:[%s0 + $0x40] sm:$0xf]
  %v36 = vld [vmem:[%s0 + $0x44] sm:$0xf]
  %v37 = vld [vmem:[%s0 + $0x48] sm:$0xf]
  %v38 = vld [vmem:[%s0 + $0x4c] sm:$0xf]
  %v39 = vld [vmem:[%s0 + $0x50] sm:$0xf]
  %v40 = vld [vmem:[%s0 + $0x54] sm:$0xf]
  %v41 = vld [vmem:[%s0 + $0x58] sm:$0xf]
  %v42 = vld [vmem:[%s0 + $0x5c] sm:$0xf]
  %v43 = vld [vmem:[%s0 + $0x60] sm:$0xf]
  %v44 = vld [vmem:[%s0 + $0x64] sm:$0xf]
  %v45 = vld [vmem:[%s0 + $0x68] sm:$0xf]
  %v46 = vld [vmem:[%s0 + $0x6c] sm:$0xf]
  %v47 = vld [vmem:[%s0 + $0x70] sm:$0xf]
  %v48 = vld [vmem:[%s0 + $0x74] sm:$0xf]
  %v49 = vld [vmem:[%s0 + $0x78] sm:$0xf]
  %v50 = vld [vmem:[%s0 + $0x7c] sm:$0xf]
  %v55 = vunpack.c.l.b16 %v15
  %v56 = vunpack.c.h.b16 %v15
  %v57 = vunpack.c.l.b16 %v16
  %v58 = vunpack.c.h.b16 %v16
  %v59 = vunpack.c.l.b16 %v17
  %v60 = vunpack.c.h.b16 %v17
  %v61 = vunpack.c.l.b16 %v18
  %v62 = vunpack.c.h.b16 %v18
  %v63 = vpack.c.b16 %v57, %v55
  %v64 = vpack.c.b16 %v58, %v56
  %v65 = vpack.c.b16 %v61, %v59
  %v66 = vpack.c.b16 %v62, %v60
  %v103 = vunpack.c.l.b16 %v19
  %v104 = vunpack.c.l.b16 %v20
  %v105 = vunpack.c.l.b16 %v21
  %v106 = vunpack.c.l.b16 %v22
  %v107 = vunpack.c.l.b16 %v23
  %v108 = vunpack.c.l.b16 %v24
  %v109 = vunpack.c.l.b16 %v25
  %v110 = vunpack.c.l.b16 %v26
  %v111 = vunpack.c.l.b16 %v27
  %v112 = vunpack.c.l.b16 %v28
  %v113 = vunpack.c.l.b16 %v29
  %v114 = vunpack.c.l.b16 %v30
  %v115 = vunpack.c.l.b16 %v31
  %v116 = vunpack.c.l.b16 %v32
  %v117 = vunpack.c.l.b16 %v33
  %v118 = vunpack.c.l.b16 %v34
  %v119 = vunpack.c.l.b16 %v35
  %v120 = vunpack.c.l.b16 %v36
  %v121 = vunpack.c.l.b16 %v37
  %v122 = vunpack.c.l.b16 %v38
  %v123 = vunpack.c.l.b16 %v39
  %v124 = vunpack.c.l.b16 %v40
  %v125 = vunpack.c.l.b16 %v41
  %v126 = vunpack.c.l.b16 %v42
  %v127 = vunpack.c.l.b16 %v43
  %v128 = vunpack.c.l.b16 %v44
  %v129 = vunpack.c.l.b16 %v45
  %v130 = vunpack.c.l.b16 %v46
  %v131 = vunpack.c.l.b16 %v47
  %v132 = vunpack.c.l.b16 %v48
  %v133 = vunpack.c.l.b16 %v49
  %v134 = vunpack.c.l.b16 %v50
  %v135 = vpack.c.b16 %v104, %v103
  %v136 = vpack.c.b16 %v106, %v105
  %v137 = vpack.c.b16 %v108, %v107
  %v138 = vpack.c.b16 %v110, %v109
  %v139 = vpack.c.b16 %v112, %v111
  %v140 = vpack.c.b16 %v114, %v113
  %v141 = vpack.c.b16 %v116, %v115
  %v142 = vpack.c.b16 %v118, %v117
  %v143 = vpack.c.b16 %v120, %v119
  %v144 = vpack.c.b16 %v122, %v121
  %v145 = vpack.c.b16 %v124, %v123
  %v146 = vpack.c.b16 %v126, %v125
  %v147 = vpack.c.b16 %v128, %v127
  %v148 = vpack.c.b16 %v130, %v129
  %v149 = vpack.c.b16 %v132, %v131
  %v150 = vpack.c.b16 %v134, %v133
  %167 = vmatprep.subr.bf16.mxu0 0
  %168 = vmatpush1.bf16.msra.mxu0 %v142
  %169 = vmatprep.subr.bf16.mxu0 0
  %170 = vmatpush1.bf16.msra.mxu0 %v141
  %171 = vmatprep.subr.bf16.mxu0 0
  %172 = vmatpush1.bf16.msra.mxu0 %v140
  %173 = vmatprep.subr.bf16.mxu0 0
  %174 = vmatpush1.bf16.msra.mxu0 %v139
  %175 = vmatprep.subr.bf16.mxu0 0
  %176 = vmatpush1.bf16.msra.mxu0 %v138
  %177 = vmatprep.subr.bf16.mxu0 0
  %178 = vmatpush1.bf16.msra.mxu0 %v137
  %179 = vmatprep.subr.bf16.mxu0 0
  %180 = vmatpush1.bf16.msra.mxu0 %v136
  %181 = vmatprep.subr.bf16.mxu0 0
  %182 = vmatpush1.bf16.msra.mxu0 %v135
  %183 = vmatprep.subr.bf16.mxu0 0
  %184 = vmatpush2.bf16.msra.mxu0 %v150
  %185 = vmatprep.subr.bf16.mxu0 0
  %186 = vmatpush2.bf16.msra.mxu0 %v149
  %187 = vmatprep.subr.bf16.mxu0 0
  %188 = vmatpush2.bf16.msra.mxu0 %v148
  %189 = vmatprep.subr.bf16.mxu0 0
  %190 = vmatpush2.bf16.msra.mxu0 %v147
  %191 = vmatprep.subr.bf16.mxu0 0
  %192 = vmatpush2.bf16.msra.mxu0 %v146
  %193 = vmatprep.subr.bf16.mxu0 0
  %194 = vmatpush2.bf16.msra.mxu0 %v145
  %195 = vmatprep.subr.bf16.mxu0 0
  %196 = vmatpush2.bf16.msra.mxu0 %v144
  %197 = vmatprep.subr.bf16.mxu0 0
  %198 = vmatpush2.bf16.msra.mxu0 %v143
  %199 = vmatprep.mubr.bf16.mxu0 %v64
  %200 = vmatmul.mubr.bf16.gmra.mxu0 %v63
  %v201 = vpop.f32.mrf.mxu0
  %v202 = vadd.f32 0.0, %v201
  %v203 = vpop.f32.mrf.mxu0
  %v204 = vpop.f32.mrf.mxu0
  %v205 = vadd.f32 0.0, %v204
  %v206 = vpop.f32.mrf.mxu0
  %207 = vmatprep.mubr.bf16.mxu0 %v66
  %208 = vmatmul.mubr.bf16.gmra.mxu0 %v65
  %v209 = vpop.f32.mrf.mxu0
  %v210 = vadd.f32 0.0, %v209
  %v211 = vpop.f32.mrf.mxu0
  %v212 = vpop.f32.mrf.mxu0
  %v213 = vadd.f32 0.0, %v212
  %v214 = vpop.f32.mrf.mxu0
  %215 = vdwg.mxu0
  %v216 = vpack.c.bf16 %v205, %v202
  %v217 = vpack.c.bf16 %v213, %v210
  %v220 = vunpack.c.l.b16 %v216
  %v221 = vunpack.c.h.b16 %v216
  %v222 = vunpack.c.l.b16 %v217
  %v223 = vunpack.c.h.b16 %v217
  %v224 = vpack.c.b16 %v220, %v220
  %v225 = vpack.c.b16 %v221, %v221
  %v226 = vpack.c.b16 %v222, %v222
  %v227 = vpack.c.b16 %v223, %v223
  %232 = vst [vmem:[%s2] sm:$0xf] %v224
  %233 = vst [vmem:[%s2 + $0x4] sm:$0xf] %v225
  %234 = vst [vmem:[%s2 + $0x8] sm:$0xf] %v226
  %235 = vst [vmem:[%s2 + $0xc] sm:$0xf] %v227
  %236 = vadd.xlane.f32.xlu0 %v202
  %v237 = vpop.xlane.xlu0 %236
  %238 = vadd.xlane.f32.xlu0 %v205
  %v239 = vpop.xlane.xlu0 %238
  %240 = vadd.xlane.f32.xlu0 %v210
  %v241 = vpop.xlane.xlu0 %240
  %242 = vadd.xlane.f32.xlu0 %v213
  %v243 = vpop.xlane.xlu0 %242
  %vm244 = vcmask 7168
  %245 = vst.msk [vmem:[%s3] sm:$0xff] %vm244, %v237
  %246 = vst.msk [vmem:[%s3 + $0x8] sm:$0xff] %vm244, %v239
  %247 = vst.msk [vmem:[%s3 + $0x10] sm:$0xff] %vm244, %v241
  %248 = vst.msk [vmem:[%s3 + $0x18] sm:$0xff] %vm244, %v243
  %v249 = vmul.f32 %v202, %v202
  %v250 = vmul.f32 %v205, %v205
  %v251 = vmul.f32 %v210, %v210
  %v252 = vmul.f32 %v213, %v213
  %253 = vadd.xlane.f32.xlu0 %v249
  %v254 = vpop.xlane.xlu0 %253
  %255 = vadd.xlane.f32.xlu0 %v250
  %v256 = vpop.xlane.xlu0 %255
  %257 = vadd.xlane.f32.xlu0 %v251
  %v258 = vpop.xlane.xlu0 %257
  %259 = vadd.xlane.f32.xlu0 %v252
  %v260 = vpop.xlane.xlu0 %259
  %261 = vst.msk [vmem:[%s4] sm:$0xff] %vm244, %v254
  %262 = vst.msk [vmem:[%s4 + $0x8] sm:$0xff] %vm244, %v256
  %263 = vst.msk [vmem:[%s4 + $0x10] sm:$0xff] %vm244, %v258
  %264 = vst.msk [vmem:[%s4 + $0x18] sm:$0xff] %vm244, %v260
  // Predicated region
  $region10: #{_lambda_.10} parent=0 // pred_check
    _
  $region11: #{_lambda_.10} parent=0 // pred_check_branch
    %266 = sbr.rel (0) target = $region13
  $region12: #{_lambda_.10} parent=0 // pred_region
    _
  $region13: #{_lambda_.10} parent=0 // pred_fallthru
    _
  // Predicated region
  $region14: #{_lambda_.10} parent=0 // pred_check
    _
  $region15: #{_lambda_.10} parent=0 // pred_check_branch
    %268 = sbr.rel (0) target = $region17
  $region16: #{_lambda_.10} parent=0 // pred_region
    _
  $region17: #{_lambda_.10} parent=0 // pred_fallthru
    _
  // Predicated region
  $region18: #{_lambda_.10} parent=0 // pred_check
    _
  $region19: #{_lambda_.10} parent=0 // pred_check_branch
    %270 = sbr.rel (0) target = $region21
  $region20: #{_lambda_.10} parent=0 // pred_region
    _
  $region21: #{_lambda_.10} parent=0 // pred_fallthru
    _
  // Predicated region
  $region22: #{_lambda_.10} parent=0 // pred_check
    _
  $region23: #{_lambda_.10} parent=0 // pred_check_branch
    %272 = sbr.rel (0) target = $region25
  $region24: #{_lambda_.10} parent=0 // pred_region
    _
  $region25: #{_lambda_.10} parent=0 // pred_fallthru
    _
  // Predicated region
  $region26: #{_lambda_.10} parent=0 // pred_check
    _
  $region27: #{_lambda_.10} parent=0 // pred_check_branch
    %274 = sbr.rel (0) target = $region29
  $region28: #{_lambda_.10} parent=0 // pred_region
    _
  $region29: #{_lambda_.10} parent=0 // pred_fallthru
    _
  // Predicated region
  $region30: #{_lambda_.10} parent=0 // pred_check
    _
  $region31: #{_lambda_.10} parent=0 // pred_check_branch
    %276 = sbr.rel (0) target = $region33
  $region32: #{_lambda_.10} parent=0 // pred_region
    _
  $region33: #{_lambda_.10} parent=0 // pred_fallthru
    _

// kernel: _lambda_.11
$region0: #{_lambda_.11}
  #allocation0 [shape = 'u32[]', space=smem, size = 0x4, offset = 0x4, fixed_abs, tag = 'smem constant byte address 0x4 - core index']
  #allocation1 [shape = 'u32[144,128]{1,0:T(1,128)}', space=vmem, size = 0x12000, scoped, tag = 'internal scratch']
  %s0 = inlined_call_operand.vmem [shape: bf16[32,128], index: 0, kind: input, shape index: {}]
  %s1 = inlined_call_operand.vmem [shape: f32[32,1], index: 1, kind: input, shape index: {}]
  %s2 = inlined_call_operand.vmem [shape: f32[32,1], index: 2, kind: input, shape index: {}]
  %s3 = inlined_call_operand.vmem [shape: bf16[32,128], index: 3, kind: output, shape index: {}]
  %s4 = sld [smem:[#allocation0]]
  $region22: #{_lambda_.11} parent=0
    _
  %s6 = ssub.s32 1, %s4
  %s7 = scalar_select 0, %s6, %s4
  // Predicated region
  $region2: #{_lambda_.11} parent=0 // pred_check
    _
  $region3: #{_lambda_.11} parent=0 // pred_check_branch
    %9 = sbr.rel (0) target = $region5
  $region4: #{_lambda_.11} parent=0 // pred_region
    _
  $region5: #{_lambda_.11} parent=0 // pred_fallthru
    _
  // Predicated region
  $region6: #{_lambda_.11} parent=0 // pred_check
    _
  $region7: #{_lambda_.11} parent=0 // pred_check_branch
    %11 = sbr.rel (0) target = $region9
  $region8: #{_lambda_.11} parent=0 // pred_region
    _
  $region9: #{_lambda_.11} parent=0 // pred_fallthru
    _
  // Predicated region
  $region10: #{_lambda_.11} parent=0 // pred_check
    _
  $region11: #{_lambda_.11} parent=0 // pred_check_branch
    %13 = sbr.rel (0) target = $region13
  $region12: #{_lambda_.11} parent=0 // pred_region
    _
  $region13: #{_lambda_.11} parent=0 // pred_fallthru
    _
  %v14 = vld [vmem:[%s0] sm:$0xf]
  %v15 = vld [vmem:[%s0 + $0x4] sm:$0xf]
  %v16 = vld [vmem:[%s0 + $0x8] sm:$0xf]
  %v17 = vld [vmem:[%s0 + $0xc] sm:$0xf]
  %v18 = vunpack.c.l.bf16 %v14
  %v19 = vunpack.c.l.bf16 %v15
  %v20 = vunpack.c.l.bf16 %v16
  %v21 = vunpack.c.l.bf16 %v17
  %v22 = vld [vmem:[%s1] sm:$0xff]
  %v23 = vld [vmem:[%s1 + $0x8] sm:$0xff]
  %v24 = vld [vmem:[%s1 + $0x10] sm:$0xff]
  %v25 = vld [vmem:[%s1 + $0x18] sm:$0xff]
  %27 = vset.pattern.permute.xlu0 0
  %28 = vperm.xlu0 %27, %v22
  %v29 = vpop.permute.xlu0 %28
  %32 = vset.pattern.permute.xlu0 0
  %33 = vperm.xlu0 %32, %v23
  %v34 = vpop.permute.xlu0 %33
  %37 = vset.pattern.permute.xlu0 0
  %38 = vperm.xlu0 %37, %v24
  %v39 = vpop.permute.xlu0 %38
  %42 = vset.pattern.permute.xlu0 0
  %43 = vperm.xlu0 %42, %v25
  %v44 = vpop.permute.xlu0 %43
  %v46 = vmul.f32 %v18, %v29
  %v47 = vmul.f32 %v19, %v34
  %v48 = vmul.f32 %v20, %v39
  %v49 = vmul.f32 %v21, %v44
  %v50 = vld [vmem:[%s2] sm:$0xff]
  %v51 = vld [vmem:[%s2 + $0x8] sm:$0xff]
  %v52 = vld [vmem:[%s2 + $0x10] sm:$0xff]
  %v53 = vld [vmem:[%s2 + $0x18] sm:$0xff]
  %55 = vset.pattern.permute.xlu0 0
  %56 = vperm.xlu0 %55, %v50
  %v57 = vpop.permute.xlu0 %56
  %60 = vset.pattern.permute.xlu0 0
  %61 = vperm.xlu0 %60, %v51
  %v62 = vpop.permute.xlu0 %61
  %65 = vset.pattern.permute.xlu0 0
  %66 = vperm.xlu0 %65, %v52
  %v67 = vpop.permute.xlu0 %66
  %70 = vset.pattern.permute.xlu0 0
  %71 = vperm.xlu0 %70, %v53
  %v72 = vpop.permute.xlu0 %71
  %v74 = vadd.f32 %v46, %v57
  %v75 = vadd.f32 %v47, %v62
  %v76 = vadd.f32 %v48, %v67
  %v77 = vadd.f32 %v49, %v72
  %v78 = vmul.f32 %v74, 0.2
  %v79 = vmul.f32 %v75, 0.2
  %v80 = vmul.f32 %v76, 0.2
  %v81 = vmul.f32 %v77, 0.2
  %v82 = vmax.f32 %v74, %v78
  %v83 = vmax.f32 %v75, %v79
  %v84 = vmax.f32 %v76, %v80
  %v85 = vmax.f32 %v77, %v81
  %v86 = vpack.c.bf16 %v83, %v82
  %v87 = vpack.c.bf16 %v85, %v84
  %v90 = vunpack.c.l.b16 %v86
  %v91 = vunpack.c.h.b16 %v86
  %v92 = vunpack.c.l.b16 %v87
  %v93 = vunpack.c.h.b16 %v87
  %v94 = vpack.c.b16 %v90, %v90
  %v95 = vpack.c.b16 %v91, %v91
  %v96 = vpack.c.b16 %v92, %v92
  %v97 = vpack.c.b16 %v93, %v93
  %102 = vst [vmem:[%s3] sm:$0xf] %v94
  %103 = vst [vmem:[%s3 + $0x4] sm:$0xf] %v95
  %104 = vst [vmem:[%s3 + $0x8] sm:$0xf] %v96
  %105 = vst [vmem:[%s3 + $0xc] sm:$0xf] %v97
  // Predicated region
  $region14: #{_lambda_.11} parent=0 // pred_check
    _
  $region15: #{_lambda_.11} parent=0 // pred_check_branch
    %107 = sbr.rel (0) target = $region17
  $region16: #{_lambda_.11} parent=0 // pred_region
    _
  $region17: #{_lambda_.11} parent=0 // pred_fallthru
    _
  // Predicated region
  $region18: #{_lambda_.11} parent=0 // pred_check
    _
  $region19: #{_lambda_.11} parent=0 // pred_check_branch
    %109 = sbr.rel (0) target = $region21
  $region20: #{_lambda_.11} parent=0 // pred_region
    _
  $region21: #{_lambda_.11} parent=0 // pred_fallthru
    _

// kernel: _lambda_.12
$region0: #{_lambda_.12}
  #allocation0 [shape = 'u32[]', space=smem, size = 0x4, offset = 0x4, fixed_abs, tag = 'smem constant byte address 0x4 - core index']
  #allocation1 [shape = 'u32[144,128]{1,0:T(1,128)}', space=vmem, size = 0x12000, scoped, tag = 'internal scratch']
  %s0 = inlined_call_operand.vmem [shape: bf16[512,128], index: 0, kind: input, shape index: {}]
  %s1 = inlined_call_operand.vmem [shape: bf16[64,512], index: 1, kind: input, shape index: {}]
  %s2 = inlined_call_operand.vmem [shape: bf16[64,128], index: 2, kind: output, shape index: {0}]
  %s3 = inlined_call_operand.vmem [shape: f32[1,64,1], index: 3, kind: output, shape index: {1}]
  %s4 = inlined_call_operand.vmem [shape: f32[1,64,1], index: 4, kind: output, shape index: {2}]
  %5 = xla_tuple %s2, %s3, %s4
  %s6 = sld [smem:[#allocation0]]
  $region34: #{_lambda_.12} parent=0
    _
  %s8 = ssub.s32 1, %s6
  %s9 = scalar_select 0, %s8, %s6
  // Predicated region
  $region2: #{_lambda_.12} parent=0 // pred_check
    _
  $region3: #{_lambda_.12} parent=0 // pred_check_branch
    %11 = sbr.rel (0) target = $region5
  $region4: #{_lambda_.12} parent=0 // pred_region
    _
  $region5: #{_lambda_.12} parent=0 // pred_fallthru
    _
  // Predicated region
  $region6: #{_lambda_.12} parent=0 // pred_check
    _
  $region7: #{_lambda_.12} parent=0 // pred_check_branch
    %13 = sbr.rel (0) target = $region9
  $region8: #{_lambda_.12} parent=0 // pred_region
    _
  $region9: #{_lambda_.12} parent=0 // pred_fallthru
    _
  %v15 = vld [vmem:[%s1] sm:$0xff]
  %v16 = vld [vmem:[%s1 + $0x8] sm:$0xff]
  %v17 = vld [vmem:[%s1 + $0x10] sm:$0xff]
  %v18 = vld [vmem:[%s1 + $0x18] sm:$0xff]
  %v19 = vld [vmem:[%s1 + $0x20] sm:$0xff]
  %v20 = vld [vmem:[%s1 + $0x28] sm:$0xff]
  %v21 = vld [vmem:[%s1 + $0x30] sm:$0xff]
  %v22 = vld [vmem:[%s1 + $0x38] sm:$0xff]
  %v23 = vld [vmem:[%s1 + $0x40] sm:$0xff]
  %v24 = vld [vmem:[%s1 + $0x48] sm:$0xff]
  %v25 = vld [vmem:[%s1 + $0x50] sm:$0xff]
  %v26 = vld [vmem:[%s1 + $0x58] sm:$0xff]
  %v27 = vld [vmem:[%s1 + $0x60] sm:$0xff]
  %v28 = vld [vmem:[%s1 + $0x68] sm:$0xff]
  %v29 = vld [vmem:[%s1 + $0x70] sm:$0xff]
  %v30 = vld [vmem:[%s1 + $0x78] sm:$0xff]
  %v31 = vld [vmem:[%s0] sm:$0xf]
  %v32 = vld [vmem:[%s0 + $0x4] sm:$0xf]
  %v33 = vld [vmem:[%s0 + $0x8] sm:$0xf]
  %v34 = vld [vmem:[%s0 + $0xc] sm:$0xf]
  %v35 = vld [vmem:[%s0 + $0x10] sm:$0xf]
  %v36 = vld [vmem:[%s0 + $0x14] sm:$0xf]
  %v37 = vld [vmem:[%s0 + $0x18] sm:$0xf]
  %v38 = vld [vmem:[%s0 + $0x1c] sm:$0xf]
  %v39 = vld [vmem:[%s0 + $0x20] sm:$0xf]
  %v40 = vld [vmem:[%s0 + $0x24] sm:$0xf]
  %v41 = vld [vmem:[%s0 + $0x28] sm:$0xf]
  %v42 = vld [vmem:[%s0 + $0x2c] sm:$0xf]
  %v43 = vld [vmem:[%s0 + $0x30] sm:$0xf]
  %v44 = vld [vmem:[%s0 + $0x34] sm:$0xf]
  %v45 = vld [vmem:[%s0 + $0x38] sm:$0xf]
  %v46 = vld [vmem:[%s0 + $0x3c] sm:$0xf]
  %v47 = vld [vmem:[%s0 + $0x40] sm:$0xf]
  %v48 = vld [vmem:[%s0 + $0x44] sm:$0xf]
  %v49 = vld [vmem:[%s0 + $0x48] sm:$0xf]
  %v50 = vld [vmem:[%s0 + $0x4c] sm:$0xf]
  %v51 = vld [vmem:[%s0 + $0x50] sm:$0xf]
  %v52 = vld [vmem:[%s0 + $0x54] sm:$0xf]
  %v53 = vld [vmem:[%s0 + $0x58] sm:$0xf]
  %v54 = vld [vmem:[%s0 + $0x5c] sm:$0xf]
  %v55 = vld [vmem:[%s0 + $0x60] sm:$0xf]
  %v56 = vld [vmem:[%s0 + $0x64] sm:$0xf]
  %v57 = vld [vmem:[%s0 + $0x68] sm:$0xf]
  %v58 = vld [vmem:[%s0 + $0x6c] sm:$0xf]
  %v59 = vld [vmem:[%s0 + $0x70] sm:$0xf]
  %v60 = vld [vmem:[%s0 + $0x74] sm:$0xf]
  %v61 = vld [vmem:[%s0 + $0x78] sm:$0xf]
  %v62 = vld [vmem:[%s0 + $0x7c] sm:$0xf]
  %v63 = vld [vmem:[%s0 + $0x80] sm:$0xf]
  %v64 = vld [vmem:[%s0 + $0x84] sm:$0xf]
  %v65 = vld [vmem:[%s0 + $0x88] sm:$0xf]
  %v66 = vld [vmem:[%s0 + $0x8c] sm:$0xf]
  %v67 = vld [vmem:[%s0 + $0x90] sm:$0xf]
  %v68 = vld [vmem:[%s0 + $0x94] sm:$0xf]
  %v69 = vld [vmem:[%s0 + $0x98] sm:$0xf]
  %v70 = vld [vmem:[%s0 + $0x9c] sm:$0xf]
  %v71 = vld [vmem:[%s0 + $0xa0] sm:$0xf]
  %v72 = vld [vmem:[%s0 + $0xa4] sm:$0xf]
  %v73 = vld [vmem:[%s0 + $0xa8] sm:$0xf]
  %v74 = vld [vmem:[%s0 + $0xac] sm:$0xf]
  %v75 = vld [vmem:[%s0 + $0xb0] sm:$0xf]
  %v76 = vld [vmem:[%s0 + $0xb4] sm:$0xf]
  %v77 = vld [vmem:[%s0 + $0xb8] sm:$0xf]
  %v78 = vld [vmem:[%s0 + $0xbc] sm:$0xf]
  %v79 = vld [vmem:[%s0 + $0xc0] sm:$0xf]
  %v80 = vld [vmem:[%s0 + $0xc4] sm:$0xf]
  %v81 = vld [vmem:[%s0 + $0xc8] sm:$0xf]
  %v82 = vld [vmem:[%s0 + $0xcc] sm:$0xf]
  %v83 = vld [vmem:[%s0 + $0xd0] sm:$0xf]
  %v84 = vld [vmem:[%s0 + $0xd4] sm:$0xf]
  %v85 = vld [vmem:[%s0 + $0xd8] sm:$0xf]
  %v86 = vld [vmem:[%s0 + $0xdc] sm:$0xf]
  %v87 = vld [vmem:[%s0 + $0xe0] sm:$0xf]
  %v88 = vld [vmem:[%s0 + $0xe4] sm:$0xf]
  %v89 = vld [vmem:[%s0 + $0xe8] sm:$0xf]
  %v90 = vld [vmem:[%s0 + $0xec] sm:$0xf]
  %v91 = vld [vmem:[%s0 + $0xf0] sm:$0xf]
  %v92 = vld [vmem:[%s0 + $0xf4] sm:$0xf]
  %v93 = vld [vmem:[%s0 + $0xf8] sm:$0xf]
  %v94 = vld [vmem:[%s0 + $0xfc] sm:$0xf]
  %v111 = vunpack.c.l.b16 %v15
  %v112 = vunpack.c.h.b16 %v15
  %v113 = vunpack.c.l.b16 %v16
  %v114 = vunpack.c.h.b16 %v16
  %v115 = vunpack.c.l.b16 %v17
  %v116 = vunpack.c.h.b16 %v17
  %v117 = vunpack.c.l.b16 %v18
  %v118 = vunpack.c.h.b16 %v18
  %v119 = vunpack.c.l.b16 %v19
  %v120 = vunpack.c.h.b16 %v19
  %v121 = vunpack.c.l.b16 %v20
  %v122 = vunpack.c.h.b16 %v20
  %v123 = vunpack.c.l.b16 %v21
  %v124 = vunpack.c.h.b16 %v21
  %v125 = vunpack.c.l.b16 %v22
  %v126 = vunpack.c.h.b16 %v22
  %v127 = vunpack.c.l.b16 %v23
  %v128 = vunpack.c.h.b16 %v23
  %v129 = vunpack.c.l.b16 %v24
  %v130 = vunpack.c.h.b16 %v24
  %v131 = vunpack.c.l.b16 %v25
  %v132 = vunpack.c.h.b16 %v25
  %v133 = vunpack.c.l.b16 %v26
  %v134 = vunpack.c.h.b16 %v26
  %v135 = vunpack.c.l.b16 %v27
  %v136 = vunpack.c.h.b16 %v27
  %v137 = vunpack.c.l.b16 %v28
  %v138 = vunpack.c.h.b16 %v28
  %v139 = vunpack.c.l.b16 %v29
  %v140 = vunpack.c.h.b16 %v29
  %v141 = vunpack.c.l.b16 %v30
  %v142 = vunpack.c.h.b16 %v30
  %v143 = vpack.c.b16 %v115, %v111
  %v144 = vpack.c.b16 %v116, %v112
  %v145 = vpack.c.b16 %v117, %v113
  %v146 = vpack.c.b16 %v118, %v114
  %v147 = vpack.c.b16 %v123, %v119
  %v148 = vpack.c.b16 %v124, %v120
  %v149 = vpack.c.b16 %v125, %v121
  %v150 = vpack.c.b16 %v126, %v122
  %v151 = vpack.c.b16 %v131, %v127
  %v152 = vpack.c.b16 %v132, %v128
  %v153 = vpack.c.b16 %v133, %v129
  %v154 = vpack.c.b16 %v134, %v130
  %v155 = vpack.c.b16 %v139, %v135
  %v156 = vpack.c.b16 %v140, %v136
  %v157 = vpack.c.b16 %v141, %v137
  %v158 = vpack.c.b16 %v142, %v138
  %v239 = vunpack.c.l.b16 %v31
  %v240 = vunpack.c.l.b16 %v32
  %v241 = vunpack.c.l.b16 %v33
  %v242 = vunpack.c.l.b16 %v34
  %v243 = vunpack.c.l.b16 %v35
  %v244 = vunpack.c.l.b16 %v36
  %v245 = vunpack.c.l.b16 %v37
  %v246 = vunpack.c.l.b16 %v38
  %v247 = vunpack.c.l.b16 %v39
  %v248 = vunpack.c.l.b16 %v40
  %v249 = vunpack.c.l.b16 %v41
  %v250 = vunpack.c.l.b16 %v42
  %v251 = vunpack.c.l.b16 %v43
  %v252 = vunpack.c.l.b16 %v44
  %v253 = vunpack.c.l.b16 %v45
  %v254 = vunpack.c.l.b16 %v46
  %v255 = vunpack.c.l.b16 %v47
  %v256 = vunpack.c.l.b16 %v48
  %v257 = vunpack.c.l.b16 %v49
  %v258 = vunpack.c.l.b16 %v50
  %v259 = vunpack.c.l.b16 %v51
  %v260 = vunpack.c.l.b16 %v52
  %v261 = vunpack.c.l.b16 %v53
  %v262 = vunpack.c.l.b16 %v54
  %v263 = vunpack.c.l.b16 %v55
  %v264 = vunpack.c.l.b16 %v56
  %v265 = vunpack.c.l.b16 %v57
  %v266 = vunpack.c.l.b16 %v58
  %v267 = vunpack.c.l.b16 %v59
  %v268 = vunpack.c.l.b16 %v60
  %v269 = vunpack.c.l.b16 %v61
  %v270 = vunpack.c.l.b16 %v62
  %v271 = vunpack.c.l.b16 %v63
  %v272 = vunpack.c.l.b16 %v64
  %v273 = vunpack.c.l.b16 %v65
  %v274 = vunpack.c.l.b16 %v66
  %v275 = vunpack.c.l.b16 %v67
  %v276 = vunpack.c.l.b16 %v68
  %v277 = vunpack.c.l.b16 %v69
  %v278 = vunpack.c.l.b16 %v70
  %v279 = vunpack.c.l.b16 %v71
  %v280 = vunpack.c.l.b16 %v72
  %v281 = vunpack.c.l.b16 %v73
  %v282 = vunpack.c.l.b16 %v74
  %v283 = vunpack.c.l.b16 %v75
  %v284 = vunpack.c.l.b16 %v76
  %v285 = vunpack.c.l.b16 %v77
  %v286 = vunpack.c.l.b16 %v78
  %v287 = vunpack.c.l.b16 %v79
  %v288 = vunpack.c.l.b16 %v80
  %v289 = vunpack.c.l.b16 %v81
  %v290 = vunpack.c.l.b16 %v82
  %v291 = vunpack.c.l.b16 %v83
  %v292 = vunpack.c.l.b16 %v84
  %v293 = vunpack.c.l.b16 %v85
  %v294 = vunpack.c.l.b16 %v86
  %v295 = vunpack.c.l.b16 %v87
  %v296 = vunpack.c.l.b16 %v88
  %v297 = vunpack.c.l.b16 %v89
  %v298 = vunpack.c.l.b16 %v90
  %v299 = vunpack.c.l.b16 %v91
  %v300 = vunpack.c.l.b16 %v92
  %v301 = vunpack.c.l.b16 %v93
  %v302 = vunpack.c.l.b16 %v94
  %v303 = vpack.c.b16 %v240, %v239
  %v304 = vpack.c.b16 %v242, %v241
  %v305 = vpack.c.b16 %v244, %v243
  %v306 = vpack.c.b16 %v246, %v245
  %v307 = vpack.c.b16 %v248, %v247
  %v308 = vpack.c.b16 %v250, %v249
  %v309 = vpack.c.b16 %v252, %v251
  %v310 = vpack.c.b16 %v254, %v253
  %v311 = vpack.c.b16 %v256, %v255
  %v312 = vpack.c.b16 %v258, %v257
  %v313 = vpack.c.b16 %v260, %v259
  %v314 = vpack.c.b16 %v262, %v261
  %v315 = vpack.c.b16 %v264, %v263
  %v316 = vpack.c.b16 %v266, %v265
  %v317 = vpack.c.b16 %v268, %v267
  %v318 = vpack.c.b16 %v270, %v269
  %v319 = vpack.c.b16 %v272, %v271
  %v320 = vpack.c.b16 %v274, %v273
  %v321 = vpack.c.b16 %v276, %v275
  %v322 = vpack.c.b16 %v278, %v277
  %v323 = vpack.c.b16 %v280, %v279
  %v324 = vpack.c.b16 %v282, %v281
  %v325 = vpack.c.b16 %v284, %v283
  %v326 = vpack.c.b16 %v286, %v285
  %v327 = vpack.c.b16 %v288, %v287
  %v328 = vpack.c.b16 %v290, %v289
  %v329 = vpack.c.b16 %v292, %v291
  %v330 = vpack.c.b16 %v294, %v293
  %v331 = vpack.c.b16 %v296, %v295
  %v332 = vpack.c.b16 %v298, %v297
  %v333 = vpack.c.b16 %v300, %v299
  %v334 = vpack.c.b16 %v302, %v301
  %367 = vmatprep.subr.bf16.mxu0 0
  %368 = vmatpush1.bf16.msra.mxu0 %v310
  %369 = vmatprep.subr.bf16.mxu0 0
  %370 = vmatpush1.bf16.msra.mxu0 %v309
  %371 = vmatprep.subr.bf16.mxu0 0
  %372 = vmatpush1.bf16.msra.mxu0 %v308
  %373 = vmatprep.subr.bf16.mxu0 0
  %374 = vmatpush1.bf16.msra.mxu0 %v307
  %375 = vmatprep.subr.bf16.mxu0 0
  %376 = vmatpush1.bf16.msra.mxu0 %v306
  %377 = vmatprep.subr.bf16.mxu0 0
  %378 = vmatpush1.bf16.msra.mxu0 %v305
  %379 = vmatprep.subr.bf16.mxu0 0
  %380 = vmatpush1.bf16.msra.mxu0 %v304
  %381 = vmatprep.subr.bf16.mxu0 0
  %382 = vmatpush1.bf16.msra.mxu0 %v303
  %383 = vmatprep.subr.bf16.mxu0 0
  %384 = vmatpush2.bf16.msra.mxu0 %v318
  %385 = vmatprep.subr.bf16.mxu0 0
  %386 = vmatpush2.bf16.msra.mxu0 %v317
  %387 = vmatprep.subr.bf16.mxu0 0
  %388 = vmatpush2.bf16.msra.mxu0 %v316
  %389 = vmatprep.subr.bf16.mxu0 0
  %390 = vmatpush2.bf16.msra.mxu0 %v315
  %391 = vmatprep.subr.bf16.mxu0 0
  %392 = vmatpush2.bf16.msra.mxu0 %v314
  %393 = vmatprep.subr.bf16.mxu0 0
  %394 = vmatpush2.bf16.msra.mxu0 %v313
  %395 = vmatprep.subr.bf16.mxu0 0
  %396 = vmatpush2.bf16.msra.mxu0 %v312
  %397 = vmatprep.subr.bf16.mxu0 0
  %398 = vmatpush2.bf16.msra.mxu0 %v311
  %399 = vmatprep.mubr.bf16.mxu0 %v144
  %400 = vmatmul.mubr.bf16.gmra.mxu0 %v143
  %v401 = vpop.f32.mrf.mxu0
  %v402 = vadd.f32 0.0, %v401
  %v403 = vpop.f32.mrf.mxu0
  %v404 = vpop.f32.mrf.mxu0
  %v405 = vadd.f32 0.0, %v404
  %v406 = vpop.f32.mrf.mxu0
  %407 = vmatprep.mubr.bf16.mxu0 %v148
  %408 = vmatmul.mubr.bf16.gmra.mxu0 %v147
  %v409 = vpop.f32.mrf.mxu0
  %v410 = vadd.f32 0.0, %v409
  %v411 = vpop.f32.mrf.mxu0
  %v412 = vpop.f32.mrf.mxu0
  %v413 = vadd.f32 0.0, %v412
  %v414 = vpop.f32.mrf.mxu0
  %415 = vmatprep.mubr.bf16.mxu0 %v152
  %416 = vmatmul.mubr.bf16.gmra.mxu0 %v151
  %v417 = vpop.f32.mrf.mxu0
  %v418 = vadd.f32 0.0, %v417
  %v419 = vpop.f32.mrf.mxu0
  %v420 = vpop.f32.mrf.mxu0
  %v421 = vadd.f32 0.0, %v420
  %v422 = vpop.f32.mrf.mxu0
  %423 = vmatprep.mubr.bf16.mxu0 %v156
  %424 = vmatmul.mubr.bf16.gmra.mxu0 %v155
  %v425 = vpop.f32.mrf.mxu0
  %v426 = vadd.f32 0.0, %v425
  %v427 = vpop.f32.mrf.mxu0
  %v428 = vpop.f32.mrf.mxu0
  %v429 = vadd.f32 0.0, %v428
  %v430 = vpop.f32.mrf.mxu0
  %431 = vdwg.mxu0
  %432 = vmatprep.subr.bf16.mxu0 0
  %433 = vmatpush1.bf16.msra.mxu0 %v326
  %434 = vmatprep.subr.bf16.mxu0 0
  %435 = vmatpush1.bf16.msra.mxu0 %v325
  %436 = vmatprep.subr.bf16.mxu0 0
  %437 = vmatpush1.bf16.msra.mxu0 %v324
  %438 = vmatprep.subr.bf16.mxu0 0
  %439 = vmatpush1.bf16.msra.mxu0 %v323
  %440 = vmatprep.subr.bf16.mxu0 0
  %441 = vmatpush1.bf16.msra.mxu0 %v322
  %442 = vmatprep.subr.bf16.mxu0 0
  %443 = vmatpush1.bf16.msra.mxu0 %v321
  %444 = vmatprep.subr.bf16.mxu0 0
  %445 = vmatpush1.bf16.msra.mxu0 %v320
  %446 = vmatprep.subr.bf16.mxu0 0
  %447 = vmatpush1.bf16.msra.mxu0 %v319
  %448 = vmatprep.subr.bf16.mxu0 0
  %449 = vmatpush2.bf16.msra.mxu0 %v334
  %450 = vmatprep.subr.bf16.mxu0 0
  %451 = vmatpush2.bf16.msra.mxu0 %v333
  %452 = vmatprep.subr.bf16.mxu0 0
  %453 = vmatpush2.bf16.msra.mxu0 %v332
  %454 = vmatprep.subr.bf16.mxu0 0
  %455 = vmatpush2.bf16.msra.mxu0 %v331
  %456 = vmatprep.subr.bf16.mxu0 0
  %457 = vmatpush2.bf16.msra.mxu0 %v330
  %458 = vmatprep.subr.bf16.mxu0 0
  %459 = vmatpush2.bf16.msra.mxu0 %v329
  %460 = vmatprep.subr.bf16.mxu0 0
  %461 = vmatpush2.bf16.msra.mxu0 %v328
  %462 = vmatprep.subr.bf16.mxu0 0
  %463 = vmatpush2.bf16.msra.mxu0 %v327
  %464 = vmatprep.mubr.bf16.mxu0 %v146
  %465 = vmatmul.mubr.bf16.gmra.mxu0 %v145
  %v466 = vpop.f32.mrf.mxu0
  %v467 = vadd.f32 %v402, %v466
  %v468 = vpop.f32.mrf.mxu0
  %v469 = vpop.f32.mrf.mxu0
  %v470 = vadd.f32 %v405, %v469
  %v471 = vpop.f32.mrf.mxu0
  %472 = vmatprep.mubr.bf16.mxu0 %v150
  %473 = vmatmul.mubr.bf16.gmra.mxu0 %v149
  %v474 = vpop.f32.mrf.mxu0
  %v475 = vadd.f32 %v410, %v474
  %v476 = vpop.f32.mrf.mxu0
  %v477 = vpop.f32.mrf.mxu0
  %v478 = vadd.f32 %v413, %v477
  %v479 = vpop.f32.mrf.mxu0
  %480 = vmatprep.mubr.bf16.mxu0 %v154
  %481 = vmatmul.mubr.bf16.gmra.mxu0 %v153
  %v482 = vpop.f32.mrf.mxu0
  %v483 = vadd.f32 %v418, %v482
  %v484 = vpop.f32.mrf.mxu0
  %v485 = vpop.f32.mrf.mxu0
  %v486 = vadd.f32 %v421, %v485
  %v487 = vpop.f32.mrf.mxu0
  %488 = vmatprep.mubr.bf16.mxu0 %v158
  %489 = vmatmul.mubr.bf16.gmra.mxu0 %v157
  %v490 = vpop.f32.mrf.mxu0
  %v491 = vadd.f32 %v426, %v490
  %v492 = vpop.f32.mrf.mxu0
  %v493 = vpop.f32.mrf.mxu0
  %v494 = vadd.f32 %v429, %v493
  %v495 = vpop.f32.mrf.mxu0
  %496 = vdwg.mxu0
  %v497 = vpack.c.bf16 %v470, %v467
  %v498 = vpack.c.bf16 %v478, %v475
  %v499 = vpack.c.bf16 %v486, %v483
  %v500 = vpack.c.bf16 %v494, %v491
  %v505 = vunpack.c.l.b16 %v497
  %v506 = vunpack.c.h.b16 %v497
  %v507 = vunpack.c.l.b16 %v498
  %v508 = vunpack.c.h.b16 %v498
  %v509 = vunpack.c.l.b16 %v499
  %v510 = vunpack.c.h.b16 %v499
  %v511 = vunpack.c.l.b16 %v500
  %v512 = vunpack.c.h.b16 %v500
  %v513 = vpack.c.b16 %v505, %v505
  %v514 = vpack.c.b16 %v506, %v506
  %v515 = vpack.c.b16 %v507, %v507
  %v516 = vpack.c.b16 %v508, %v508
  %v517 = vpack.c.b16 %v509, %v509
  %v518 = vpack.c.b16 %v510, %v510
  %v519 = vpack.c.b16 %v511, %v511
  %v520 = vpack.c.b16 %v512, %v512
  %529 = vst [vmem:[%s2] sm:$0xf] %v513
  %530 = vst [vmem:[%s2 + $0x4] sm:$0xf] %v514
  %531 = vst [vmem:[%s2 + $0x8] sm:$0xf] %v515
  %532 = vst [vmem:[%s2 + $0xc] sm:$0xf] %v516
  %533 = vst [vmem:[%s2 + $0x10] sm:$0xf] %v517
  %534 = vst [vmem:[%s2 + $0x14] sm:$0xf] %v518
  %535 = vst [vmem:[%s2 + $0x18] sm:$0xf] %v519
  %536 = vst [vmem:[%s2 + $0x1c] sm:$0xf] %v520
  %537 = vadd.xlane.f32.xlu0 %v467
  %v538 = vpop.xlane.xlu0 %537
  %539 = vadd.xlane.f32.xlu0 %v470
  %v540 = vpop.xlane.xlu0 %539
  %541 = vadd.xlane.f32.xlu0 %v475
  %v542 = vpop.xlane.xlu0 %541
  %543 = vadd.xlane.f32.xlu0 %v478
  %v544 = vpop.xlane.xlu0 %543
  %545 = vadd.xlane.f32.xlu0 %v483
  %v546 = vpop.xlane.xlu0 %545
  %547 = vadd.xlane.f32.xlu0 %v486
  %v548 = vpop.xlane.xlu0 %547
  %549 = vadd.xlane.f32.xlu0 %v491
  %v550 = vpop.xlane.xlu0 %549
  %551 = vadd.xlane.f32.xlu0 %v494
  %v552 = vpop.xlane.xlu0 %551
  %vm553 = vcmask 7168
  %554 = vst.msk [vmem:[%s3] sm:$0xff] %vm553, %v538
  %555 = vst.msk [vmem:[%s3 + $0x8] sm:$0xff] %vm553, %v540
  %556 = vst.msk [vmem:[%s3 + $0x10] sm:$0xff] %vm553, %v542
  %557 = vst.msk [vmem:[%s3 + $0x18] sm:$0xff] %vm553, %v544
  %558 = vst.msk [vmem:[%s3 + $0x20] sm:$0xff] %vm553, %v546
  %559 = vst.msk [vmem:[%s3 + $0x28] sm:$0xff] %vm553, %v548
  %560 = vst.msk [vmem:[%s3 + $0x30] sm:$0xff] %vm553, %v550
  %561 = vst.msk [vmem:[%s3 + $0x38] sm:$0xff] %vm553, %v552
  %v562 = vmul.f32 %v467, %v467
  %v563 = vmul.f32 %v470, %v470
  %v564 = vmul.f32 %v475, %v475
  %v565 = vmul.f32 %v478, %v478
  %v566 = vmul.f32 %v483, %v483
  %v567 = vmul.f32 %v486, %v486
  %v568 = vmul.f32 %v491, %v491
  %v569 = vmul.f32 %v494, %v494
  %570 = vadd.xlane.f32.xlu0 %v562
  %v571 = vpop.xlane.xlu0 %570
  %572 = vadd.xlane.f32.xlu0 %v563
  %v573 = vpop.xlane.xlu0 %572
  %574 = vadd.xlane.f32.xlu0 %v564
  %v575 = vpop.xlane.xlu0 %574
  %576 = vadd.xlane.f32.xlu0 %v565
  %v577 = vpop.xlane.xlu0 %576
  %578 = vadd.xlane.f32.xlu0 %v566
  %v579 = vpop.xlane.xlu0 %578
  %580 = vadd.xlane.f32.xlu0 %v567
  %v581 = vpop.xlane.xlu0 %580
  %582 = vadd.xlane.f32.xlu0 %v568
  %v583 = vpop.xlane.xlu0 %582
  %584 = vadd.xlane.f32.xlu0 %v569
  %v585 = vpop.xlane.xlu0 %584
  %586 = vst.msk [vmem:[%s4] sm:$0xff] %vm553, %v571
  %587 = vst.msk [vmem:[%s4 + $0x8] sm:$0xff] %vm553, %v573
  %588 = vst.msk [vmem:[%s4 + $0x10] sm:$0xff] %vm553, %v575
  %589 = vst.msk [vmem:[%s4 + $0x18] sm:$0xff] %vm553, %v577
  %590 = vst.msk [vmem:[%s4 + $0x20] sm:$0xff] %vm553, %v579
  %591 = vst.msk [vmem:[%s4 + $0x28] sm:$0xff] %vm553, %v581
  %592 = vst.msk [vmem:[%s4 + $0x30] sm:$0xff] %vm553, %v583
  %593 = vst.msk [vmem:[%s4 + $0x38] sm:$0xff] %vm553, %v585
  // Predicated region
  $region10: #{_lambda_.12} parent=0 // pred_check
    _
  $region11: #{_lambda_.12} parent=0 // pred_check_branch
    %595 = sbr.rel (0) target = $region13
  $region12: #{_lambda_.12} parent=0 // pred_region
    _
  $region13: #{_lambda_.12} parent=0 // pred_fallthru
    _
  // Predicated region
  $region14: #{_lambda_.12} parent=0 // pred_check
    _
  $region15: #{_lambda_.12} parent=0 // pred_check_branch
    %597 = sbr.rel (0) target = $region17
  $region16: #{_lambda_.12} parent=0 // pred_region
    _
  $region17: #{_lambda_.12} parent=0 // pred_fallthru
    _
  // Predicated region
  $region18: #{_lambda_.12} parent=0 // pred_check
    _
  $region19: #{_lambda_.12} parent=0 // pred_check_branch
    %599 = sbr.rel (0) target = $region21
  $region20: #{_lambda_.12} parent=0 // pred_region
    _
  $region21: #{_lambda_.12} parent=0 // pred_fallthru
    _
  // Predicated region
  $region22: #{_lambda_.12} parent=0 // pred_check
    _
  $region23: #{_lambda_.12} parent=0 // pred_check_branch
    %601 = sbr.rel (0) target = $region25
  $region24: #{_lambda_.12} parent=0 // pred_region
    _
  $region25: #{_lambda_.12} parent=0 // pred_fallthru
    _
  // Predicated region
  $region26: #{_lambda_.12} parent=0 // pred_check
    _
  $region27: #{_lambda_.12} parent=0 // pred_check_branch
    %603 = sbr.rel (0) target = $region29
  $region28: #{_lambda_.12} parent=0 // pred_region
    _
  $region29: #{_lambda_.12} parent=0 // pred_fallthru
    _
  // Predicated region
  $region30: #{_lambda_.12} parent=0 // pred_check
    _
  $region31: #{_lambda_.12} parent=0 // pred_check_branch
    %605 = sbr.rel (0) target = $region33
  $region32: #{_lambda_.12} parent=0 // pred_region
    _
  $region33: #{_lambda_.12} parent=0 // pred_fallthru
    _

// kernel: _lambda_.13
$region0: #{_lambda_.13}
  #allocation0 [shape = 'u32[]', space=smem, size = 0x4, offset = 0x4, fixed_abs, tag = 'smem constant byte address 0x4 - core index']
  #allocation1 [shape = 'u32[144,128]{1,0:T(1,128)}', space=vmem, size = 0x12000, scoped, tag = 'internal scratch']
  %s0 = inlined_call_operand.vmem [shape: bf16[64,128], index: 0, kind: input, shape index: {}]
  %s1 = inlined_call_operand.vmem [shape: f32[64,1], index: 1, kind: input, shape index: {}]
  %s2 = inlined_call_operand.vmem [shape: f32[64,1], index: 2, kind: input, shape index: {}]
  %s3 = inlined_call_operand.vmem [shape: bf16[64,128], index: 3, kind: output, shape index: {}]
  %s4 = sld [smem:[#allocation0]]
  $region22: #{_lambda_.13} parent=0
    _
  %s6 = ssub.s32 1, %s4
  %s7 = scalar_select 0, %s6, %s4
  // Predicated region
  $region2: #{_lambda_.13} parent=0 // pred_check
    _
  $region3: #{_lambda_.13} parent=0 // pred_check_branch
    %9 = sbr.rel (0) target = $region5
  $region4: #{_lambda_.13} parent=0 // pred_region
    _
  $region5: #{_lambda_.13} parent=0 // pred_fallthru
    _
  // Predicated region
  $region6: #{_lambda_.13} parent=0 // pred_check
    _
  $region7: #{_lambda_.13} parent=0 // pred_check_branch
    %11 = sbr.rel (0) target = $region9
  $region8: #{_lambda_.13} parent=0 // pred_region
    _
  $region9: #{_lambda_.13} parent=0 // pred_fallthru
    _
  // Predicated region
  $region10: #{_lambda_.13} parent=0 // pred_check
    _
  $region11: #{_lambda_.13} parent=0 // pred_check_branch
    %13 = sbr.rel (0) target = $region13
  $region12: #{_lambda_.13} parent=0 // pred_region
    _
  $region13: #{_lambda_.13} parent=0 // pred_fallthru
    _
  %v14 = vld [vmem:[%s0] sm:$0xf]
  %v15 = vld [vmem:[%s0 + $0x4] sm:$0xf]
  %v16 = vld [vmem:[%s0 + $0x8] sm:$0xf]
  %v17 = vld [vmem:[%s0 + $0xc] sm:$0xf]
  %v18 = vld [vmem:[%s0 + $0x10] sm:$0xf]
  %v19 = vld [vmem:[%s0 + $0x14] sm:$0xf]
  %v20 = vld [vmem:[%s0 + $0x18] sm:$0xf]
  %v21 = vld [vmem:[%s0 + $0x1c] sm:$0xf]
  %v22 = vunpack.c.l.bf16 %v14
  %v23 = vunpack.c.l.bf16 %v15
  %v24 = vunpack.c.l.bf16 %v16
  %v25 = vunpack.c.l.bf16 %v17
  %v26 = vunpack.c.l.bf16 %v18
  %v27 = vunpack.c.l.bf16 %v19
  %v28 = vunpack.c.l.bf16 %v20
  %v29 = vunpack.c.l.bf16 %v21
  %v30 = vld [vmem:[%s1] sm:$0xff]
  %v31 = vld [vmem:[%s1 + $0x8] sm:$0xff]
  %v32 = vld [vmem:[%s1 + $0x10] sm:$0xff]
  %v33 = vld [vmem:[%s1 + $0x18] sm:$0xff]
  %v34 = vld [vmem:[%s1 + $0x20] sm:$0xff]
  %v35 = vld [vmem:[%s1 + $0x28] sm:$0xff]
  %v36 = vld [vmem:[%s1 + $0x30] sm:$0xff]
  %v37 = vld [vmem:[%s1 + $0x38] sm:$0xff]
  %39 = vset.pattern.permute.xlu0 0
  %40 = vperm.xlu0 %39, %v30
  %v41 = vpop.permute.xlu0 %40
  %44 = vset.pattern.permute.xlu0 0
  %45 = vperm.xlu0 %44, %v31
  %v46 = vpop.permute.xlu0 %45
  %49 = vset.pattern.permute.xlu0 0
  %50 = vperm.xlu0 %49, %v32
  %v51 = vpop.permute.xlu0 %50
  %54 = vset.pattern.permute.xlu0 0
  %55 = vperm.xlu0 %54, %v33
  %v56 = vpop.permute.xlu0 %55
  %59 = vset.pattern.permute.xlu0 0
  %60 = vperm.xlu0 %59, %v34
  %v61 = vpop.permute.xlu0 %60
  %64 = vset.pattern.permute.xlu0 0
  %65 = vperm.xlu0 %64, %v35
  %v66 = vpop.permute.xlu0 %65
  %69 = vset.pattern.permute.xlu0 0
  %70 = vperm.xlu0 %69, %v36
  %v71 = vpop.permute.xlu0 %70
  %74 = vset.pattern.permute.xlu0 0
  %75 = vperm.xlu0 %74, %v37
  %v76 = vpop.permute.xlu0 %75
  %v78 = vmul.f32 %v22, %v41
  %v79 = vmul.f32 %v23, %v46
  %v80 = vmul.f32 %v24, %v51
  %v81 = vmul.f32 %v25, %v56
  %v82 = vmul.f32 %v26, %v61
  %v83 = vmul.f32 %v27, %v66
  %v84 = vmul.f32 %v28, %v71
  %v85 = vmul.f32 %v29, %v76
  %v86 = vld [vmem:[%s2] sm:$0xff]
  %v87 = vld [vmem:[%s2 + $0x8] sm:$0xff]
  %v88 = vld [vmem:[%s2 + $0x10] sm:$0xff]
  %v89 = vld [vmem:[%s2 + $0x18] sm:$0xff]
  %v90 = vld [vmem:[%s2 + $0x20] sm:$0xff]
  %v91 = vld [vmem:[%s2 + $0x28] sm:$0xff]
  %v92 = vld [vmem:[%s2 + $0x30] sm:$0xff]
  %v93 = vld [vmem:[%s2 + $0x38] sm:$0xff]
  %95 = vset.pattern.permute.xlu0 0
  %96 = vperm.xlu0 %95, %v86
  %v97 = vpop.permute.xlu0 %96
  %100 = vset.pattern.permute.xlu0 0
  %101 = vperm.xlu0 %100, %v87
  %v102 = vpop.permute.xlu0 %101
  %105 = vset.pattern.permute.xlu0 0
  %106 = vperm.xlu0 %105, %v88
  %v107 = vpop.permute.xlu0 %106
  %110 = vset.pattern.permute.xlu0 0
  %111 = vperm.xlu0 %110, %v89
  %v112 = vpop.permute.xlu0 %111
  %115 = vset.pattern.permute.xlu0 0
  %116 = vperm.xlu0 %115, %v90
  %v117 = vpop.permute.xlu0 %116
  %120 = vset.pattern.permute.xlu0 0
  %121 = vperm.xlu0 %120, %v91
  %v122 = vpop.permute.xlu0 %121
  %125 = vset.pattern.permute.xlu0 0
  %126 = vperm.xlu0 %125, %v92
  %v127 = vpop.permute.xlu0 %126
  %130 = vset.pattern.permute.xlu0 0
  %131 = vperm.xlu0 %130, %v93
  %v132 = vpop.permute.xlu0 %131
  %v134 = vadd.f32 %v78, %v97
  %v135 = vadd.f32 %v79, %v102
  %v136 = vadd.f32 %v80, %v107
  %v137 = vadd.f32 %v81, %v112
  %v138 = vadd.f32 %v82, %v117
  %v139 = vadd.f32 %v83, %v122
  %v140 = vadd.f32 %v84, %v127
  %v141 = vadd.f32 %v85, %v132
  %v142 = vmul.f32 %v134, 0.2
  %v143 = vmul.f32 %v135, 0.2
  %v144 = vmul.f32 %v136, 0.2
  %v145 = vmul.f32 %v137, 0.2
  %v146 = vmul.f32 %v138, 0.2
  %v147 = vmul.f32 %v139, 0.2
  %v148 = vmul.f32 %v140, 0.2
  %v149 = vmul.f32 %v141, 0.2
  %v150 = vmax.f32 %v134, %v142
  %v151 = vmax.f32 %v135, %v143
  %v152 = vmax.f32 %v136, %v144
  %v153 = vmax.f32 %v137, %v145
  %v154 = vmax.f32 %v138, %v146
  %v155 = vmax.f32 %v139, %v147
  %v156 = vmax.f32 %v140, %v148
  %v157 = vmax.f32 %v141, %v149
  %v158 = vpack.c.bf16 %v151, %v150
  %v159 = vpack.c.bf16 %v153, %v152
  %v160 = vpack.c.bf16 %v155, %v154
  %v161 = vpack.c.bf16 %v157, %v156
  %v166 = vunpack.c.l.b16 %v158
  %v167 = vunpack.c.h.b16 %v158
  %v168 = vunpack.c.l.b16 %v159
  %v169 = vunpack.c.h.b16 %v159
  %v170 = vunpack.c.l.b16 %v160
  %v171 = vunpack.c.h.b16 %v160
  %v172 = vunpack.c.l.b16 %v161
  %v173 = vunpack.c.h.b16 %v161
  %v174 = vpack.c.b16 %v166, %v166
  %v175 = vpack.c.b16 %v167, %v167
  %v176 = vpack.c.b16 %v168, %v168
  %v177 = vpack.c.b16 %v169, %v169
  %v178 = vpack.c.b16 %v170, %v170
  %v179 = vpack.c.b16 %v171, %v171
  %v180 = vpack.c.b16 %v172, %v172
  %v181 = vpack.c.b16 %v173, %v173
  %190 = vst [vmem:[%s3] sm:$0xf] %v174
  %191 = vst [vmem:[%s3 + $0x4] sm:$0xf] %v175
  %192 = vst [vmem:[%s3 + $0x8] sm:$0xf] %v176
  %193 = vst [vmem:[%s3 + $0xc] sm:$0xf] %v177
  %194 = vst [vmem:[%s3 + $0x10] sm:$0xf] %v178
  %195 = vst [vmem:[%s3 + $0x14] sm:$0xf] %v179
  %196 = vst [vmem:[%s3 + $0x18] sm:$0xf] %v180
  %197 = vst [vmem:[%s3 + $0x1c] sm:$0xf] %v181
  // Predicated region
  $region14: #{_lambda_.13} parent=0 // pred_check
    _
  $region15: #{_lambda_.13} parent=0 // pred_check_branch
    %199 = sbr.rel (0) target = $region17
  $region16: #{_lambda_.13} parent=0 // pred_region
    _
  $region17: #{_lambda_.13} parent=0 // pred_fallthru
    _
  // Predicated region
  $region18: #{_lambda_.13} parent=0 // pred_check
    _
  $region19: #{_lambda_.13} parent=0 // pred_check_branch
    %201 = sbr.rel (0) target = $region21
  $region20: #{_lambda_.13} parent=0 // pred_region
    _
  $region21: #{_lambda_.13} parent=0 // pred_fallthru
    _

</llo_original>
